<compile_context>
chip_gen: v7x
topology: tpu7x:2x2x1
jax: 0.10.0
libtpu: 0.0.40
codegen_flags: <defaults>
</compile_context>

<pallas_src>
import functools

import jax
import jax.numpy as jnp
from jax.experimental import pallas as pl
from jax.experimental.pallas import tpu as pltpu


def _pointwise_conv_kernel(x_ref, *refs, n_out, compute_dtype):
    """x_ref: (C, tn).  refs = [w0, b0, w1, b1, ..., o0, o1, ...].

    w_i: (Oi, C) in compute_dtype, b_i: (Oi, 1) f32, o_i: (Oi, tn).
    """
    w_refs = refs[0:2 * n_out:2]
    b_refs = refs[1:2 * n_out:2]
    out_refs = refs[2 * n_out:]

    # In-kernel cast of the input tile (no wrapper-side HBM pass over x).
    x_tile = x_ref[...].astype(compute_dtype)

    for w_ref, b_ref, o_ref in zip(w_refs, b_refs, out_refs):
        acc = jnp.dot(w_ref[...], x_tile, preferred_element_type=jnp.float32)
        acc = acc + b_ref[...]                 # bias / epilogue stays f32
        o_ref[...] = acc.astype(o_ref.dtype)


def _vmem_caps():
    """(tile-selection budget, vmem_limit cap) in bytes, generation-aware."""
    try:
        phys = int(pltpu.get_tpu_info().vmem_capacity_bytes)
    except Exception:
        phys = 64 * 2**20                      # conservative: v7x per-TC VMEM
    if phys <= 64 * 2**20:                     # v7x
        return 40 * 2**20, 48 * 2**20
    return 80 * 2**20, 100 * 2**20             # v5e / v6e (128 MiB physical)


def _need_bytes(c, sizes, tn, x_bytes, w_bytes, o_bytes, weight_buffers):
    """Conservative VMEM footprint for one pipelined grid step."""
    ot = sum(sizes)
    omax = max(sizes)
    need = 2 * c * tn * x_bytes                                   # x tile (double-buffered)
    need += 2 * ot * tn * o_bytes                                 # outputs (double-buffered)
    need += weight_buffers * ot * c * w_bytes                     # resident weights
    need += weight_buffers * sum(((s + 7) // 8) * 8 for s in sizes) * 128 * 4  # lane-padded biases
    need += c * tn * w_bytes                                      # in-kernel cast of x tile
    need += omax * tn * 4                                         # largest per-output f32 dot result
    return need


def _select_tn(hw, c, sizes, x_bytes, w_bytes, o_bytes, batch, budget, weight_buffers):
    """Largest HW tile (multiple of 128, <=1024) fitting the VMEM budget."""
    if hw <= 128:
        return hw
    cap = 1024
    if batch == 1:
        # Keep enough grid steps that double-buffering actually hides DMAs,
        # and both v7x TensorCores get >= ~4 iterations each.
        if hw >= 8 * 512:
            cap = min(cap, max(512, (hw // 8) // 128 * 128))
        elif hw >= 256:
            cap = min(cap, max(128, (hw // 2) // 128 * 128))
    best, tn = 128, 128
    while tn <= min(cap, hw):
        if _need_bytes(c, sizes, tn, x_bytes, w_bytes, o_bytes, weight_buffers) <= budget:
            best = tn
        tn += 128
    return best


def _pointwise_conv_multi(x_ncl, weights, biases, *, compute_dtype=jnp.float32,
                          out_dtype=None, tn=None):
    """Fused 1x1 convs in NCHW layout.

    x_ncl:   (B, C, HW)  (native dtype; cast to compute_dtype happens in-kernel)
    weights: sequence of (Oi, C) arrays (ideally pre-cast to compute_dtype)
    biases:  sequence of (Oi,) f32 arrays
    Returns a tuple of (B, Oi, HW) arrays in out_dtype (default: compute_dtype).
    """
    B, C, HW = x_ncl.shape
    sizes = tuple(int(w.shape[0]) for w in weights)
    Ot = sum(sizes)
    if out_dtype is None:
        out_dtype = compute_dtype

    x_bytes = jnp.dtype(x_ncl.dtype).itemsize
    w_bytes = jnp.dtype(compute_dtype).itemsize
    o_bytes = jnp.dtype(out_dtype).itemsize
    budget, limit_cap = _vmem_caps()

    # Inputs: x, then (w_i, b_i) pairs.  Weights are cast once here only if the
    # caller did not already cache a compute_dtype copy.
    args = [x_ncl]
    for w, b, o in zip(weights, biases, sizes):
        args.append(w if w.dtype == jnp.dtype(compute_dtype) else w.astype(compute_dtype))
        args.append(b.reshape(o, 1).astype(jnp.float32))

    def build_and_call(weight_buffers):
        tn_ = tn if tn is not None else _select_tn(
            HW, C, sizes, x_bytes, w_bytes, o_bytes, B, budget, weight_buffers)
        num_tiles = pl.cdiv(HW, tn_)
        need = _need_bytes(C, sizes, tn_, x_bytes, w_bytes, o_bytes, weight_buffers)
        vmem_limit = int(min(limit_cap, max(need + 8 * 2**20, 24 * 2**20)))

        wb_mode = pl.Buffered(weight_buffers) if weight_buffers != 2 else None
        in_specs = [pl.BlockSpec((None, C, tn_), lambda b, j: (b, 0, j))]
        for o in sizes:
            in_specs.append(pl.BlockSpec((o, C), lambda b, j: (0, 0),
                                         pipeline_mode=wb_mode))
            in_specs.append(pl.BlockSpec((o, 1), lambda b, j: (0, 0),
                                         pipeline_mode=wb_mode))
        out_specs = tuple(pl.BlockSpec((None, o, tn_), lambda b, j: (b, 0, j))
                          for o in sizes)

        cost = pl.CostEstimate(
            flops=2 * C * Ot * HW * B,
            transcendentals=0,
            bytes_accessed=B * HW * (C * x_bytes + Ot * o_bytes) + Ot * C * w_bytes + Ot * 4,
        )

        kernel = functools.partial(_pointwise_conv_kernel, n_out=len(sizes),
                                   compute_dtype=compute_dtype)

        return pl.pallas_call(
            kernel,
            out_shape=tuple(jax.ShapeDtypeStruct((B, o, HW), out_dtype) for o in sizes),
            grid_spec=pltpu.PrefetchScalarGridSpec(
                num_scalar_prefetch=0,
                grid=(B, num_tiles),
                in_specs=in_specs,
                out_specs=out_specs,
            ),
            compiler_params=pltpu.CompilerParams(
                dimension_semantics=("parallel", "parallel"),
                vmem_limit_bytes=vmem_limit,
            ),
            cost_estimate=cost,
        )(*args)

    try:
        out = build_and_call(weight_buffers=1)      # single-buffered resident weights
    except Exception:
        out = build_and_call(weight_buffers=2)      # fallback: default double-buffering
    return tuple(out)


class ConvQKVPallas:
    """JAX/Pallas port of ConvQKV (kernel_size=1, stride=1, groups=1, bias=True)."""

    def __init__(self, input_dim, heads=8, dim_head=64, qk_frac=1.0, bias=True,
                 compute_dtype=jnp.float32, key=jax.random.PRNGKey(0)):
        inner_dim = dim_head * heads
        inner_dim_qk = max(int(qk_frac * dim_head), 1) * heads
        self.heads = heads
        self.inner_dim = inner_dim
        self.inner_dim_qk = inner_dim_qk
        self.compute_dtype = compute_dtype

        # Deterministic init mimicking PyTorch Conv2d default
        # (kaiming uniform: U(-1/sqrt(fan_in), 1/sqrt(fan_in)); fan_in = C*1*1).
        fan_in = input_dim
        bound = 1.0 / float(fan_in) ** 0.5
        kq, kk, kv, kbq, kbk, kbv = jax.random.split(key, 6)

        def u(k, shape):
            return jax.random.uniform(k, shape, jnp.float32, -bound, bound)

        # PyTorch conv weight is (O, C, 1, 1); store as (O, C) for W @ x (NCHW-native).
        self.wq = u(kq, (inner_dim_qk, input_dim))
        self.wk = u(kk, (inner_dim_qk, input_dim))
        self.wv = u(kv, (inner_dim, input_dim))
        if bias:
            self.bq = u(kbq, (inner_dim_qk,))
            self.bk = u(kbk, (inner_dim_qk,))
            self.bv = u(kbv, (inner_dim,))
        else:
            self.bq = jnp.zeros((inner_dim_qk,), jnp.float32)
            self.bk = jnp.zeros((inner_dim_qk,), jnp.float32)
            self.bv = jnp.zeros((inner_dim,), jnp.float32)

        # Cache per-dtype weight copies so the cast is done once, not per call.
        self._w_cache = {jnp.dtype(jnp.float32): (self.wq, self.wk, self.wv)}

    def _weights_for(self, dtype):
        dt = jnp.dtype(dtype)
        if dt not in self._w_cache:
            self._w_cache[dt] = tuple(w.astype(dt) for w in (self.wq, self.wk, self.wv))
        return self._w_cache[dt]

    def __call__(self, x, attn_kv=None, compute_dtype=None, out_dtype=None):
        # x: (B, C, H, W) NCHW
        b, c, h, w = x.shape
        hw = h * w
        cd = self.compute_dtype if compute_dtype is None else compute_dtype
        od = cd if out_dtype is None else out_dtype
        oq, ok, ov = self.inner_dim_qk, self.inner_dim_qk, self.inner_dim
        wq, wk, wv = self._weights_for(cd)

        x_mat = x.reshape(b, c, hw)  # free: NCHW is already (B, C, H*W)

        if attn_kv is None:
            kb_, kh, kw = b, h, w
            q, k, v = _pointwise_conv_multi(
                x_mat, (wq, wk, wv), (self.bq, self.bk, self.bv),
                compute_dtype=cd, out_dtype=od)
        else:
            kb_, kc, kh, kw = attn_kv.shape
            kv_mat = attn_kv.reshape(kb_, kc, kh * kw)
            (q,) = _pointwise_conv_multi(x_mat, (wq,), (self.bq,),
                                         compute_dtype=cd, out_dtype=od)
            k, v = _pointwise_conv_multi(kv_mat, (wk, wv), (self.bk, self.bv),
                                         compute_dtype=cd, out_dtype=od)

        return (q.reshape(b, oq, h, w),
                k.reshape(kb_, ok, kh, kw),
                v.reshape(kb_, ov, kh, kw))


def _reference(x, attn_kv, module):
    """Pure-JAX reference (1x1 conv == einsum over channels), f32."""
    kv = x if attn_kv is None else attn_kv
    q = jnp.einsum('bchw,oc->bohw', x, module.wq) + module.bq[None, :, None, None]
    k = jnp.einsum('bchw,oc->bohw', kv, module.wk) + module.bk[None, :, None, None]
    v = jnp.einsum('bchw,oc->bohw', kv, module.wv) + module.bv[None, :, None, None]
    return q, k, v


if __name__ == "__main__":
    key = jax.random.PRNGKey(0)
    k_x, k_kv, k_params = jax.random.split(key, 3)

    # Small shapes: B=2, C=4, H=W=16, heads=2, dim_head=16 -> inner dims = 32.
    B, C, H, W = 2, 4, 16, 16
    x = jax.random.normal(k_x, (B, C, H, W), jnp.float32)

    module = ConvQKVPallas(input_dim=C, heads=2, dim_head=16, qk_frac=1.0,
                           bias=True, key=k_params)

    # --- f32 path: tight tolerance vs pure-JAX reference ------------------
    q, k, v = module(x)
    jax.block_until_ready((q, k, v))
    q_ref, k_ref, v_ref = _reference(x, None, module)
    assert q.shape == (B, 32, H, W) and k.shape == (B, 32, H, W) and v.shape == (B, 32, H, W)
    assert q.dtype == jnp.float32
    assert jnp.allclose(q, q_ref, atol=1e-5, rtol=1e-5)
    assert jnp.allclose(k, k_ref, atol=1e-5, rtol=1e-5)
    assert jnp.allclose(v, v_ref, atol=1e-5, rtol=1e-5)

    # --- bf16 MXU path (f32 accumulation, bf16 outputs): looser tolerance --
    qb, kb, vb = module(x, compute_dtype=jnp.bfloat16)
    jax.block_until_ready((qb, kb, vb))
    assert qb.dtype == jnp.bfloat16 and kb.dtype == jnp.bfloat16 and vb.dtype == jnp.bfloat16
    assert jnp.allclose(qb.astype(jnp.float32), q_ref, atol=3e-2, rtol=3e-2)
    assert jnp.allclose(kb.astype(jnp.float32), k_ref, atol=3e-2, rtol=3e-2)
    assert jnp.allclose(vb.astype(jnp.float32), v_ref, atol=3e-2, rtol=3e-2)

    # --- separate attn_kv path ---------------------------------------------
    x_kv = jax.random.normal(k_kv, (B, C, H, W), jnp.float32)
    q2, k2, v2 = module(x, attn_kv=x_kv)
    jax.block_until_ready((q2, k2, v2))
    q2_ref, k2_ref, v2_ref = _reference(x, x_kv, module)
    assert jnp.allclose(q2, q2_ref, atol=1e-5, rtol=1e-5)
    assert jnp.allclose(k2, k2_ref, atol=1e-5, rtol=1e-5)
    assert jnp.allclose(v2, v2_ref, atol=1e-5, rtol=1e-5)

    print("KERNEL_OK")
</pallas_src>

<mosaic_0001>
module attributes {stable_mosaic.version = 11 : i64} {
  func.func @_pointwise_conv_kernel(%arg0: i32, %arg1: i32, %arg2: memref<1x4x256xf32, #tpu.memory_space<vmem>>, %arg3: memref<32x4xf32, #tpu.memory_space<vmem>>, %arg4: memref<32x1xf32, #tpu.memory_space<vmem>>, %arg5: memref<32x4xf32, #tpu.memory_space<vmem>>, %arg6: memref<32x1xf32, #tpu.memory_space<vmem>>, %arg7: memref<32x4xf32, #tpu.memory_space<vmem>>, %arg8: memref<32x1xf32, #tpu.memory_space<vmem>>, %arg9: memref<1x32x256xf32, #tpu.memory_space<vmem>>, %arg10: memref<1x32x256xf32, #tpu.memory_space<vmem>>, %arg11: memref<1x32x256xf32, #tpu.memory_space<vmem>>) attributes {dimension_semantics = [#tpu.dimension_semantics<parallel>, #tpu.dimension_semantics<parallel>], iteration_bounds = array<i64: 2, 1>, scalar_prefetch = 0 : i64, scratch_operands = 0 : i64, tpu.core_type = #tpu.core_type<tc>, window_params = [{transform_indices = @transform_0, window_bounds = array<i64: 1, 4, 256>}, {pipeline_mode = #tpu.pipeline_mode<synchronous>, transform_indices = @transform_1, window_bounds = array<i64: 32, 4>}, {pipeline_mode = #tpu.pipeline_mode<synchronous>, transform_indices = @transform_2, window_bounds = array<i64: 32, 1>}, {pipeline_mode = #tpu.pipeline_mode<synchronous>, transform_indices = @transform_3, window_bounds = array<i64: 32, 4>}, {pipeline_mode = #tpu.pipeline_mode<synchronous>, transform_indices = @transform_4, window_bounds = array<i64: 32, 1>}, {pipeline_mode = #tpu.pipeline_mode<synchronous>, transform_indices = @transform_5, window_bounds = array<i64: 32, 4>}, {pipeline_mode = #tpu.pipeline_mode<synchronous>, transform_indices = @transform_6, window_bounds = array<i64: 32, 1>}, {transform_indices = @transform_7, window_bounds = array<i64: 1, 32, 256>}, {transform_indices = @transform_8, window_bounds = array<i64: 1, 32, 256>}, {transform_indices = @transform_9, window_bounds = array<i64: 1, 32, 256>}]} {
    %c0 = arith.constant 0 : index
    %c0_0 = arith.constant 0 : index
    %c0_1 = arith.constant 0 : index
    %0 = vector.load %arg2[%c0, %c0_0, %c0_1] : memref<1x4x256xf32, #tpu.memory_space<vmem>>, vector<1x4x256xf32>
    %1 = vector.shape_cast %0 : vector<1x4x256xf32> to vector<4x256xf32>
    %c0_2 = arith.constant 0 : index
    %c0_3 = arith.constant 0 : index
    %2 = vector.load %arg3[%c0_2, %c0_3] : memref<32x4xf32, #tpu.memory_space<vmem>>, vector<32x4xf32>
    %cst = arith.constant dense<0.000000e+00> : vector<32x256xf32>
    %3 = tpu.matmul %2, %1, %cst {dimension_numbers = #tpu.dot_dimension_numbers<[1], [0], [0], [1], [0, 0, 1, 1], [], []>} : vector<32x4xf32>, vector<4x256xf32>, vector<32x256xf32> -> vector<32x256xf32>
    %c0_4 = arith.constant 0 : index
    %c0_5 = arith.constant 0 : index
    %4 = vector.load %arg4[%c0_4, %c0_5] : memref<32x1xf32, #tpu.memory_space<vmem>>, vector<32x1xf32>
    %5 = vector.broadcast %4 : vector<32x1xf32> to vector<32x256xf32>
    %6 = arith.addf %3, %5 : vector<32x256xf32>
    %c0_6 = arith.constant 0 : index
    %c0_7 = arith.constant 0 : index
    %c0_8 = arith.constant 0 : index
    %7 = vector.load %arg9[%c0_6, %c0_7, %c0_8] : memref<1x32x256xf32, #tpu.memory_space<vmem>>, vector<1x32x256xf32>
    %8 = vector.shape_cast %7 : vector<1x32x256xf32> to vector<32x256xf32>
    %9 = vector.shape_cast %6 : vector<32x256xf32> to vector<1x32x256xf32>
    tpu.vector_store %arg9[%c0_6, %c0_7, %c0_8], %9 {strides = array<i32>} : memref<1x32x256xf32, #tpu.memory_space<vmem>>, vector<1x32x256xf32>,
    %c0_9 = arith.constant 0 : index
    %c0_10 = arith.constant 0 : index
    %10 = vector.load %arg5[%c0_9, %c0_10] : memref<32x4xf32, #tpu.memory_space<vmem>>, vector<32x4xf32>
    %cst_11 = arith.constant dense<0.000000e+00> : vector<32x256xf32>
    %11 = tpu.matmul %10, %1, %cst_11 {dimension_numbers = #tpu.dot_dimension_numbers<[1], [0], [0], [1], [0, 0, 1, 1], [], []>} : vector<32x4xf32>, vector<4x256xf32>, vector<32x256xf32> -> vector<32x256xf32>
    %c0_12 = arith.constant 0 : index
    %c0_13 = arith.constant 0 : index
    %12 = vector.load %arg6[%c0_12, %c0_13] : memref<32x1xf32, #tpu.memory_space<vmem>>, vector<32x1xf32>
    %13 = vector.broadcast %12 : vector<32x1xf32> to vector<32x256xf32>
    %14 = arith.addf %11, %13 : vector<32x256xf32>
    %c0_14 = arith.constant 0 : index
    %c0_15 = arith.constant 0 : index
    %c0_16 = arith.constant 0 : index
    %15 = vector.load %arg10[%c0_14, %c0_15, %c0_16] : memref<1x32x256xf32, #tpu.memory_space<vmem>>, vector<1x32x256xf32>
    %16 = vector.shape_cast %15 : vector<1x32x256xf32> to vector<32x256xf32>
    %17 = vector.shape_cast %14 : vector<32x256xf32> to vector<1x32x256xf32>
    tpu.vector_store %arg10[%c0_14, %c0_15, %c0_16], %17 {strides = array<i32>} : memref<1x32x256xf32, #tpu.memory_space<vmem>>, vector<1x32x256xf32>,
    %c0_17 = arith.constant 0 : index
    %c0_18 = arith.constant 0 : index
    %18 = vector.load %arg7[%c0_17, %c0_18] : memref<32x4xf32, #tpu.memory_space<vmem>>, vector<32x4xf32>
    %cst_19 = arith.constant dense<0.000000e+00> : vector<32x256xf32>
    %19 = tpu.matmul %18, %1, %cst_19 {dimension_numbers = #tpu.dot_dimension_numbers<[1], [0], [0], [1], [0, 0, 1, 1], [], []>} : vector<32x4xf32>, vector<4x256xf32>, vector<32x256xf32> -> vector<32x256xf32>
    %c0_20 = arith.constant 0 : index
    %c0_21 = arith.constant 0 : index
    %20 = vector.load %arg8[%c0_20, %c0_21] : memref<32x1xf32, #tpu.memory_space<vmem>>, vector<32x1xf32>
    %21 = vector.broadcast %20 : vector<32x1xf32> to vector<32x256xf32>
    %22 = arith.addf %19, %21 : vector<32x256xf32>
    %c0_22 = arith.constant 0 : index
    %c0_23 = arith.constant 0 : index
    %c0_24 = arith.constant 0 : index
    %23 = vector.load %arg11[%c0_22, %c0_23, %c0_24] : memref<1x32x256xf32, #tpu.memory_space<vmem>>, vector<1x32x256xf32>
    %24 = vector.shape_cast %23 : vector<1x32x256xf32> to vector<32x256xf32>
    %25 = vector.shape_cast %22 : vector<32x256xf32> to vector<1x32x256xf32>
    tpu.vector_store %arg11[%c0_22, %c0_23, %c0_24], %25 {strides = array<i32>} : memref<1x32x256xf32, #tpu.memory_space<vmem>>, vector<1x32x256xf32>,
    return
  }
  func.func @transform_0(%arg0: i32, %arg1: i32) -> (i32, i32, i32) {
    %c0_i32 = arith.constant 0 : i32
    %c0_i32_0 = arith.constant 0 : i32
    return %arg0, %c0_i32, %arg1 : i32, i32, i32
  }
  func.func @transform_1(%arg0: i32, %arg1: i32) -> (i32, i32) {
    %c0_i32 = arith.constant 0 : i32
    %c0_i32_0 = arith.constant 0 : i32
    %c0_i32_1 = arith.constant 0 : i32
    return %c0_i32, %c0_i32_0 : i32, i32
  }
  func.func @transform_2(%arg0: i32, %arg1: i32) -> (i32, i32) {
    %c0_i32 = arith.constant 0 : i32
    %c0_i32_0 = arith.constant 0 : i32
    %c0_i32_1 = arith.constant 0 : i32
    return %c0_i32, %c0_i32_0 : i32, i32
  }
  func.func @transform_3(%arg0: i32, %arg1: i32) -> (i32, i32) {
    %c0_i32 = arith.constant 0 : i32
    %c0_i32_0 = arith.constant 0 : i32
    %c0_i32_1 = arith.constant 0 : i32
    return %c0_i32, %c0_i32_0 : i32, i32
  }
  func.func @transform_4(%arg0: i32, %arg1: i32) -> (i32, i32) {
    %c0_i32 = arith.constant 0 : i32
    %c0_i32_0 = arith.constant 0 : i32
    %c0_i32_1 = arith.constant 0 : i32
    return %c0_i32, %c0_i32_0 : i32, i32
  }
  func.func @transform_5(%arg0: i32, %arg1: i32) -> (i32, i32) {
    %c0_i32 = arith.constant 0 : i32
    %c0_i32_0 = arith.constant 0 : i32
    %c0_i32_1 = arith.constant 0 : i32
    return %c0_i32, %c0_i32_0 : i32, i32
  }
  func.func @transform_6(%arg0: i32, %arg1: i32) -> (i32, i32) {
    %c0_i32 = arith.constant 0 : i32
    %c0_i32_0 = arith.constant 0 : i32
    %c0_i32_1 = arith.constant 0 : i32
    return %c0_i32, %c0_i32_0 : i32, i32
  }
  func.func @transform_7(%arg0: i32, %arg1: i32) -> (i32, i32, i32) {
    %c0_i32 = arith.constant 0 : i32
    %c0_i32_0 = arith.constant 0 : i32
    return %arg0, %c0_i32, %arg1 : i32, i32, i32
  }
  func.func @transform_8(%arg0: i32, %arg1: i32) -> (i32, i32, i32) {
    %c0_i32 = arith.constant 0 : i32
    %c0_i32_0 = arith.constant 0 : i32
    return %arg0, %c0_i32, %arg1 : i32, i32, i32
  }
  func.func @transform_9(%arg0: i32, %arg1: i32) -> (i32, i32, i32) {
    %c0_i32 = arith.constant 0 : i32
    %c0_i32_0 = arith.constant 0 : i32
    return %arg0, %c0_i32, %arg1 : i32, i32, i32
  }
}

module attributes {stable_mosaic.version = 11 : i64} {
  func.func @_pointwise_conv_kernel(%arg0: i32, %arg1: i32, %arg2: memref<1x4x256xf32, #tpu.memory_space<vmem>>, %arg3: memref<32x4xf32, #tpu.memory_space<vmem>>, %arg4: memref<32x1xf32, #tpu.memory_space<vmem>>, %arg5: memref<32x4xf32, #tpu.memory_space<vmem>>, %arg6: memref<32x1xf32, #tpu.memory_space<vmem>>, %arg7: memref<32x4xf32, #tpu.memory_space<vmem>>, %arg8: memref<32x1xf32, #tpu.memory_space<vmem>>, %arg9: memref<1x32x256xf32, #tpu.memory_space<vmem>>, %arg10: memref<1x32x256xf32, #tpu.memory_space<vmem>>, %arg11: memref<1x32x256xf32, #tpu.memory_space<vmem>>) attributes {dimension_semantics = [#tpu.dimension_semantics<parallel>, #tpu.dimension_semantics<parallel>], iteration_bounds = array<i64: 2, 1>, scalar_prefetch = 0 : i64, scratch_operands = 0 : i64, tpu.core_type = #tpu.core_type<tc>, window_params = [{transform_indices = @transform_0, window_bounds = array<i64: 1, 4, 256>}, {pipeline_mode = #tpu.pipeline_mode<synchronous>, transform_indices = @transform_1, window_bounds = array<i64: 32, 4>}, {pipeline_mode = #tpu.pipeline_mode<synchronous>, transform_indices = @transform_2, window_bounds = array<i64: 32, 1>}, {pipeline_mode = #tpu.pipeline_mode<synchronous>, transform_indices = @transform_3, window_bounds = array<i64: 32, 4>}, {pipeline_mode = #tpu.pipeline_mode<synchronous>, transform_indices = @transform_4, window_bounds = array<i64: 32, 1>}, {pipeline_mode = #tpu.pipeline_mode<synchronous>, transform_indices = @transform_5, window_bounds = array<i64: 32, 4>}, {pipeline_mode = #tpu.pipeline_mode<synchronous>, transform_indices = @transform_6, window_bounds = array<i64: 32, 1>}, {transform_indices = @transform_7, window_bounds = array<i64: 1, 32, 256>}, {transform_indices = @transform_8, window_bounds = array<i64: 1, 32, 256>}, {transform_indices = @transform_9, window_bounds = array<i64: 1, 32, 256>}]} {
    %c0 = arith.constant 0 : index
    %c0_0 = arith.constant 0 : index
    %c0_1 = arith.constant 0 : index
    %0 = vector.load %arg2[%c0, %c0_0, %c0_1] : memref<1x4x256xf32, #tpu.memory_space<vmem>>, vector<1x4x256xf32>
    %1 = vector.shape_cast %0 : vector<1x4x256xf32> to vector<4x256xf32>
    %c0_2 = arith.constant 0 : index
    %c0_3 = arith.constant 0 : index
    %2 = vector.load %arg3[%c0_2, %c0_3] : memref<32x4xf32, #tpu.memory_space<vmem>>, vector<32x4xf32>
    %cst = arith.constant dense<0.000000e+00> : vector<32x256xf32>
    %3 = tpu.matmul %2, %1, %cst {dimension_numbers = #tpu.dot_dimension_numbers<[1], [0], [0], [1], [0, 0, 1, 1], [], []>} : vector<32x4xf32>, vector<4x256xf32>, vector<32x256xf32> -> vector<32x256xf32>
    %c0_4 = arith.constant 0 : index
    %c0_5 = arith.constant 0 : index
    %4 = vector.load %arg4[%c0_4, %c0_5] : memref<32x1xf32, #tpu.memory_space<vmem>>, vector<32x1xf32>
    %5 = vector.broadcast %4 : vector<32x1xf32> to vector<32x256xf32>
    %6 = arith.addf %3, %5 : vector<32x256xf32>
    %c0_6 = arith.constant 0 : index
    %c0_7 = arith.constant 0 : index
    %c0_8 = arith.constant 0 : index
    %7 = vector.load %arg9[%c0_6, %c0_7, %c0_8] : memref<1x32x256xf32, #tpu.memory_space<vmem>>, vector<1x32x256xf32>
    %8 = vector.shape_cast %7 : vector<1x32x256xf32> to vector<32x256xf32>
    %9 = vector.shape_cast %6 : vector<32x256xf32> to vector<1x32x256xf32>
    tpu.vector_store %arg9[%c0_6, %c0_7, %c0_8], %9 {strides = array<i32>} : memref<1x32x256xf32, #tpu.memory_space<vmem>>, vector<1x32x256xf32>,
    %c0_9 = arith.constant 0 : index
    %c0_10 = arith.constant 0 : index
    %10 = vector.load %arg5[%c0_9, %c0_10] : memref<32x4xf32, #tpu.memory_space<vmem>>, vector<32x4xf32>
    %cst_11 = arith.constant dense<0.000000e+00> : vector<32x256xf32>
    %11 = tpu.matmul %10, %1, %cst_11 {dimension_numbers = #tpu.dot_dimension_numbers<[1], [0], [0], [1], [0, 0, 1, 1], [], []>} : vector<32x4xf32>, vector<4x256xf32>, vector<32x256xf32> -> vector<32x256xf32>
    %c0_12 = arith.constant 0 : index
    %c0_13 = arith.constant 0 : index
    %12 = vector.load %arg6[%c0_12, %c0_13] : memref<32x1xf32, #tpu.memory_space<vmem>>, vector<32x1xf32>
    %13 = vector.broadcast %12 : vector<32x1xf32> to vector<32x256xf32>
    %14 = arith.addf %11, %13 : vector<32x256xf32>
    %c0_14 = arith.constant 0 : index
    %c0_15 = arith.constant 0 : index
    %c0_16 = arith.constant 0 : index
    %15 = vector.load %arg10[%c0_14, %c0_15, %c0_16] : memref<1x32x256xf32, #tpu.memory_space<vmem>>, vector<1x32x256xf32>
    %16 = vector.shape_cast %15 : vector<1x32x256xf32> to vector<32x256xf32>
    %17 = vector.shape_cast %14 : vector<32x256xf32> to vector<1x32x256xf32>
    tpu.vector_store %arg10[%c0_14, %c0_15, %c0_16], %17 {strides = array<i32>} : memref<1x32x256xf32, #tpu.memory_space<vmem>>, vector<1x32x256xf32>,
    %c0_17 = arith.constant 0 : index
    %c0_18 = arith.constant 0 : index
    %18 = vector.load %arg7[%c0_17, %c0_18] : memref<32x4xf32, #tpu.memory_space<vmem>>, vector<32x4xf32>
    %cst_19 = arith.constant dense<0.000000e+00> : vector<32x256xf32>
    %19 = tpu.matmul %18, %1, %cst_19 {dimension_numbers = #tpu.dot_dimension_numbers<[1], [0], [0], [1], [0, 0, 1, 1], [], []>} : vector<32x4xf32>, vector<4x256xf32>, vector<32x256xf32> -> vector<32x256xf32>
    %c0_20 = arith.constant 0 : index
    %c0_21 = arith.constant 0 : index
    %20 = vector.load %arg8[%c0_20, %c0_21] : memref<32x1xf32, #tpu.memory_space<vmem>>, vector<32x1xf32>
    %21 = vector.broadcast %20 : vector<32x1xf32> to vector<32x256xf32>
    %22 = arith.addf %19, %21 : vector<32x256xf32>
    %c0_22 = arith.constant 0 : index
    %c0_23 = arith.constant 0 : index
    %c0_24 = arith.constant 0 : index
    %23 = vector.load %arg11[%c0_22, %c0_23, %c0_24] : memref<1x32x256xf32, #tpu.memory_space<vmem>>, vector<1x32x256xf32>
    %24 = vector.shape_cast %23 : vector<1x32x256xf32> to vector<32x256xf32>
    %25 = vector.shape_cast %22 : vector<32x256xf32> to vector<1x32x256xf32>
    tpu.vector_store %arg11[%c0_22, %c0_23, %c0_24], %25 {strides = array<i32>} : memref<1x32x256xf32, #tpu.memory_space<vmem>>, vector<1x32x256xf32>,
    return
  }
  func.func @transform_0(%arg0: i32, %arg1: i32) -> (i32, i32, i32) {
    %c0_i32 = arith.constant 0 : i32
    %c0_i32_0 = arith.constant 0 : i32
    return %arg0, %c0_i32, %arg1 : i32, i32, i32
  }
  func.func @transform_1(%arg0: i32, %arg1: i32) -> (i32, i32) {
    %c0_i32 = arith.constant 0 : i32
    %c0_i32_0 = arith.constant 0 : i32
    %c0_i32_1 = arith.constant 0 : i32
    return %c0_i32, %c0_i32_0 : i32, i32
  }
  func.func @transform_2(%arg0: i32, %arg1: i32) -> (i32, i32) {
    %c0_i32 = arith.constant 0 : i32
    %c0_i32_0 = arith.constant 0 : i32
    %c0_i32_1 = arith.constant 0 : i32
    return %c0_i32, %c0_i32_0 : i32, i32
  }
  func.func @transform_3(%arg0: i32, %arg1: i32) -> (i32, i32) {
    %c0_i32 = arith.constant 0 : i32
    %c0_i32_0 = arith.constant 0 : i32
    %c0_i32_1 = arith.constant 0 : i32
    return %c0_i32, %c0_i32_0 : i32, i32
  }
  func.func @transform_4(%arg0: i32, %arg1: i32) -> (i32, i32) {
    %c0_i32 = arith.constant 0 : i32
    %c0_i32_0 = arith.constant 0 : i32
    %c0_i32_1 = arith.constant 0 : i32
    return %c0_i32, %c0_i32_0 : i32, i32
  }
  func.func @transform_5(%arg0: i32, %arg1: i32) -> (i32, i32) {
    %c0_i32 = arith.constant 0 : i32
    %c0_i32_0 = arith.constant 0 : i32
    %c0_i32_1 = arith.constant 0 : i32
    return %c0_i32, %c0_i32_0 : i32, i32
  }
  func.func @transform_6(%arg0: i32, %arg1: i32) -> (i32, i32) {
    %c0_i32 = arith.constant 0 : i32
    %c0_i32_0 = arith.constant 0 : i32
    %c0_i32_1 = arith.constant 0 : i32
    return %c0_i32, %c0_i32_0 : i32, i32
  }
  func.func @transform_7(%arg0: i32, %arg1: i32) -> (i32, i32, i32) {
    %c0_i32 = arith.constant 0 : i32
    %c0_i32_0 = arith.constant 0 : i32
    return %arg0, %c0_i32, %arg1 : i32, i32, i32
  }
  func.func @transform_8(%arg0: i32, %arg1: i32) -> (i32, i32, i32) {
    %c0_i32 = arith.constant 0 : i32
    %c0_i32_0 = arith.constant 0 : i32
    return %arg0, %c0_i32, %arg1 : i32, i32, i32
  }
  func.func @transform_9(%arg0: i32, %arg1: i32) -> (i32, i32, i32) {
    %c0_i32 = arith.constant 0 : i32
    %c0_i32_0 = arith.constant 0 : i32
    return %arg0, %c0_i32, %arg1 : i32, i32, i32
  }
}

</mosaic_0001>

<llo_original>
// kernel: tpu_custom_call.1
$region0: #{tpu_custom_call.1}
  #allocation0 [shape = 'u32[]', space=smem, size = 0x4, offset = 0x4, fixed_abs, tag = 'smem constant byte address 0x4 - core index']
  #allocation1 [shape = 'u32[144,128]{1,0:T(1,128)}', space=vmem, size = 0x12000, scoped, tag = 'internal scratch']
  %s0 = inlined_call_operand.vmem [shape: f32[2,4,256], index: 0, kind: input, shape index: {}]
  %s1 = inlined_call_operand.vmem [shape: f32[32,4], index: 1, kind: input, shape index: {}]
  %s2 = inlined_call_operand.vmem [shape: f32[32,1], index: 2, kind: input, shape index: {}]
  %s3 = inlined_call_operand.vmem [shape: f32[32,4], index: 3, kind: input, shape index: {}]
  %s4 = inlined_call_operand.vmem [shape: f32[32,1], index: 4, kind: input, shape index: {}]
  %s5 = inlined_call_operand.vmem [shape: f32[32,4], index: 5, kind: input, shape index: {}]
  %s6 = inlined_call_operand.vmem [shape: f32[32,1], index: 6, kind: input, shape index: {}]
  %s7 = inlined_call_operand.hbm [shape: f32[2,32,256], index: 7, kind: output, shape index: {0}]
  %s8 = inlined_call_operand.hbm [shape: f32[2,32,256], index: 8, kind: output, shape index: {1}]
  %s9 = inlined_call_operand.hbm [shape: f32[2,32,256], index: 9, kind: output, shape index: {2}]
  %10 = xla_tuple %s7, %s8, %s9
  %s11 = sld [smem:[#allocation0]]
  $region77: #{tpu_custom_call.1} parent=0
    _
  %s13 = ssub.s32 1, %s11
  %s14 = scalar_select 0, %s13, %s11
  $region1: #{tpu_custom_call.1} parent=0
    #allocation2 [shape = 'u8[65536]{0}', space=vmem, size = 0x10000, scoped, tag = 'output window, operand 0']
    #allocation3 [shape = 's32[2]{0}', space=sflag, size = 0x8, scoped, tag = 'scoped memory for tpu_custom_call.1']
    #allocation4 [shape = 'u8[65536]{0}', space=vmem, size = 0x10000, scoped, tag = 'output window, operand 1']
    #allocation5 [shape = 's32[2]{0}', space=sflag, size = 0x8, scoped, tag = 'scoped memory for tpu_custom_call.1']
    #allocation6 [shape = 'u8[65536]{0}', space=vmem, size = 0x10000, scoped, tag = 'output window, operand 2']
    %15 = vsyncpa [#allocation3], 0
    %s16 = scalar_lea.sflag [#allocation3], 1
    %17 = vsyncpa %s16, 0
    %18 = vsyncpa [#allocation5], 0
    %s19 = scalar_lea.sflag [#allocation5], 1
    %20 = vsyncpa %s19, 0
    loop: start=0, step=1, limit=4
    $region2: #{tpu_custom_call.1} parent=1 // loop_pre_header
      _
    $region3: #{tpu_custom_call.1} parent=1 // loop_header
      %s22 = sphi 0, %s26
      %p23 = scmp.ge.s32.totalorder %s22, 4
      %s29 = sphi 0, %s41
      %s30 = sphi 0, %s37
      %s31 = sphi 0, %s29
      %s32 = sphi 0, %s30
      %s33 = sphi 0, %s31
      %s34 = sphi 0, %s32
      %s46 = sphi 0, %s48
      %s49 = sphi 0, %s46
      %s50 = sphi 0, %s49
      %s66 = sphi 0, %s50
      %s70 = sphi 0, %s70
      %s72 = sphi 0, %s70
      %s73 = sphi 0, %s72
      %s87 = sphi 0, %s73
      %s91 = sphi 0, %s91
      %s93 = sphi 0, %s91
      %s94 = sphi 0, %s93
      %s108 = sphi 0, %s94
      %s112 = sphi 0, %s112
      %s114 = sphi 0, %s112
      %s115 = sphi 0, %s114
      %s129 = sphi 0, %s115
      %s133 = sphi 0, %s133
      %s135 = sphi 0, %s133
      %s136 = sphi 0, %s135
      %s150 = sphi 0, %s136
      %s154 = sphi 0, %s154
      %s156 = sphi 0, %s154
      %s157 = sphi 0, %s156
      %s171 = sphi 0, %s157
      %s175 = sphi 0, %s175
      %s177 = sphi 0, %s175
      %s178 = sphi 0, %s177
      %s192 = sphi 0, %s178
      %s200 = sphi 0, %s202
      %s203 = sphi 0, %s200
      %s204 = sphi 0, %s203
      %s220 = sphi 0, %s204
      %s228 = sphi 0, %s230
      %s231 = sphi 0, %s228
      %s232 = sphi 0, %s231
      %s248 = sphi 0, %s232
      %s256 = sphi 0, %s258
      %s259 = sphi 0, %s256
      %s260 = sphi 0, %s259
      %s276 = sphi 0, %s260
    $region4: #{tpu_custom_call.1} parent=1 // loop_header_branch
      %25 = sbr.rel (%p23) target = $region8
    $region5: #{tpu_custom_call.1} parent=1 // loop_body
      %s27 = ssub.s32 %s22, 1
      %s28 = ssub.s32 %s22, 2
      %s35 = sadd.s32 1, %s30
      %p36 = scmp.ge.s32.totalorder %s35, 1
      %s37 = scalar_select %p36, 0, %s35
      %s38 = sadd.s32 1, %s29
      %s39 = scalar_select %p36, %s38, %s29
      %p40 = scmp.ge.s32.totalorder %s39, 2
      %s41 = scalar_select %p40, 0, %s39
      %s42 = ssub.s32 %s29, %s41
      %s43 = ssub.s32 %s30, %s37
      %s44 = sor.u32 %s42, %s43
      %p45 = scmp.eq.s32.totalorder %s44, 0
      %s47 = sadd.s32 %s46, 1
      %s48 = scalar_select %p45, %s46, %s47
      %p51 = pneg %p45
      %p52 = scmp.eq.s32.totalorder %s22, 1
      %p53 = por %p51, %p52
      %p54 = scmp.ne.s32.totalorder %s46, %s49
      %p55 = scmp.eq.s32.totalorder %s22, 0
      %p56 = por %p54, %p55
      %p57 = scmp.ne.s32.totalorder %s46, %s49
      %p58 = scmp.eq.s32.totalorder %s27, 1
      %p59 = por %p57, %p58
      %p60 = scmp.ne.s32.totalorder %s49, %s50
      %p61 = scmp.eq.s32.totalorder %s27, 0
      %p62 = por %p60, %p61
      %p63 = scmp.ne.s32.totalorder %s49, %s50
      %p64 = scmp.eq.s32.totalorder %s28, 1
      %p65 = por %p63, %p64
      %p67 = scmp.ne.s32.totalorder %s50, %s66
      %p68 = scmp.eq.s32.totalorder %s28, 0
      %p69 = por %p67, %p68
      %s71 = sadd.s32 %s70, 1
      %p74 = scmp.eq.s32.totalorder %s22, 1
      %p75 = scmp.ne.s32.totalorder %s70, %s72
      %p76 = scmp.eq.s32.totalorder %s22, 0
      %p77 = por %p75, %p76
      %p78 = scmp.ne.s32.totalorder %s70, %s72
      %p79 = scmp.eq.s32.totalorder %s27, 1
      %p80 = por %p78, %p79
      %p81 = scmp.ne.s32.totalorder %s72, %s73
      %p82 = scmp.eq.s32.totalorder %s27, 0
      %p83 = por %p81, %p82
      %p84 = scmp.ne.s32.totalorder %s72, %s73
      %p85 = scmp.eq.s32.totalorder %s28, 1
      %p86 = por %p84, %p85
      %p88 = scmp.ne.s32.totalorder %s73, %s87
      %p89 = scmp.eq.s32.totalorder %s28, 0
      %p90 = por %p88, %p89
      %s92 = sadd.s32 %s91, 1
      %p95 = scmp.eq.s32.totalorder %s22, 1
      %p96 = scmp.ne.s32.totalorder %s91, %s93
      %p97 = scmp.eq.s32.totalorder %s22, 0
      %p98 = por %p96, %p97
      %p99 = scmp.ne.s32.totalorder %s91, %s93
      %p100 = scmp.eq.s32.totalorder %s27, 1
      %p101 = por %p99, %p100
      %p102 = scmp.ne.s32.totalorder %s93, %s94
      %p103 = scmp.eq.s32.totalorder %s27, 0
      %p104 = por %p102, %p103
      %p105 = scmp.ne.s32.totalorder %s93, %s94
      %p106 = scmp.eq.s32.totalorder %s28, 1
      %p107 = por %p105, %p106
      %p109 = scmp.ne.s32.totalorder %s94, %s108
      %p110 = scmp.eq.s32.totalorder %s28, 0
      %p111 = por %p109, %p110
      %s113 = sadd.s32 %s112, 1
      %p116 = scmp.eq.s32.totalorder %s22, 1
      %p117 = scmp.ne.s32.totalorder %s112, %s114
      %p118 = scmp.eq.s32.totalorder %s22, 0
      %p119 = por %p117, %p118
      %p120 = scmp.ne.s32.totalorder %s112, %s114
      %p121 = scmp.eq.s32.totalorder %s27, 1
      %p122 = por %p120, %p121
      %p123 = scmp.ne.s32.totalorder %s114, %s115
      %p124 = scmp.eq.s32.totalorder %s27, 0
      %p125 = por %p123, %p124
      %p126 = scmp.ne.s32.totalorder %s114, %s115
      %p127 = scmp.eq.s32.totalorder %s28, 1
      %p128 = por %p126, %p127
      %p130 = scmp.ne.s32.totalorder %s115, %s129
      %p131 = scmp.eq.s32.totalorder %s28, 0
      %p132 = por %p130, %p131
      %s134 = sadd.s32 %s133, 1
      %p137 = scmp.eq.s32.totalorder %s22, 1
      %p138 = scmp.ne.s32.totalorder %s133, %s135
      %p139 = scmp.eq.s32.totalorder %s22, 0
      %p140 = por %p138, %p139
      %p141 = scmp.ne.s32.totalorder %s133, %s135
      %p142 = scmp.eq.s32.totalorder %s27, 1
      %p143 = por %p141, %p142
      %p144 = scmp.ne.s32.totalorder %s135, %s136
      %p145 = scmp.eq.s32.totalorder %s27, 0
      %p146 = por %p144, %p145
      %p147 = scmp.ne.s32.totalorder %s135, %s136
      %p148 = scmp.eq.s32.totalorder %s28, 1
      %p149 = por %p147, %p148
      %p151 = scmp.ne.s32.totalorder %s136, %s150
      %p152 = scmp.eq.s32.totalorder %s28, 0
      %p153 = por %p151, %p152
      %s155 = sadd.s32 %s154, 1
      %p158 = scmp.eq.s32.totalorder %s22, 1
      %p159 = scmp.ne.s32.totalorder %s154, %s156
      %p160 = scmp.eq.s32.totalorder %s22, 0
      %p161 = por %p159, %p160
      %p162 = scmp.ne.s32.totalorder %s154, %s156
      %p163 = scmp.eq.s32.totalorder %s27, 1
      %p164 = por %p162, %p163
      %p165 = scmp.ne.s32.totalorder %s156, %s157
      %p166 = scmp.eq.s32.totalorder %s27, 0
      %p167 = por %p165, %p166
      %p168 = scmp.ne.s32.totalorder %s156, %s157
      %p169 = scmp.eq.s32.totalorder %s28, 1
      %p170 = por %p168, %p169
      %p172 = scmp.ne.s32.totalorder %s157, %s171
      %p173 = scmp.eq.s32.totalorder %s28, 0
      %p174 = por %p172, %p173
      %s176 = sadd.s32 %s175, 1
      %p179 = scmp.eq.s32.totalorder %s22, 1
      %p180 = scmp.ne.s32.totalorder %s175, %s177
      %p181 = scmp.eq.s32.totalorder %s22, 0
      %p182 = por %p180, %p181
      %p183 = scmp.ne.s32.totalorder %s175, %s177
      %p184 = scmp.eq.s32.totalorder %s27, 1
      %p185 = por %p183, %p184
      %p186 = scmp.ne.s32.totalorder %s177, %s178
      %p187 = scmp.eq.s32.totalorder %s27, 0
      %p188 = por %p186, %p187
      %p189 = scmp.ne.s32.totalorder %s177, %s178
      %p190 = scmp.eq.s32.totalorder %s28, 1
      %p191 = por %p189, %p190
      %p193 = scmp.ne.s32.totalorder %s178, %s192
      %p194 = scmp.eq.s32.totalorder %s28, 0
      %p195 = por %p193, %p194
      %s196 = ssub.s32 %s29, %s41
      %s197 = ssub.s32 %s30, %s37
      %s198 = sor.u32 %s196, %s197
      %p199 = scmp.eq.s32.totalorder %s198, 0
      %s201 = sadd.s32 %s200, 1
      %s202 = scalar_select %p199, %s200, %s201
      %p205 = pneg %p199
      %p206 = scmp.eq.s32.totalorder %s22, 1
      %p207 = por %p205, %p206
      %p208 = scmp.ne.s32.totalorder %s200, %s203
      %p209 = scmp.eq.s32.totalorder %s22, 0
      %p210 = por %p208, %p209
      %p211 = scmp.ne.s32.totalorder %s200, %s203
      %p212 = scmp.eq.s32.totalorder %s27, 1
      %p213 = por %p211, %p212
      %p214 = scmp.ne.s32.totalorder %s203, %s204
      %p215 = scmp.eq.s32.totalorder %s27, 0
      %p216 = por %p214, %p215
      %p217 = scmp.ne.s32.totalorder %s203, %s204
      %p218 = scmp.eq.s32.totalorder %s28, 1
      %p219 = por %p217, %p218
      %p221 = scmp.ne.s32.totalorder %s204, %s220
      %p222 = scmp.eq.s32.totalorder %s28, 0
      %p223 = por %p221, %p222
      %s224 = ssub.s32 %s29, %s41
      %s225 = ssub.s32 %s30, %s37
      %s226 = sor.u32 %s224, %s225
      %p227 = scmp.eq.s32.totalorder %s226, 0
      %s229 = sadd.s32 %s228, 1
      %s230 = scalar_select %p227, %s228, %s229
      %p233 = pneg %p227
      %p234 = scmp.eq.s32.totalorder %s22, 1
      %p235 = por %p233, %p234
      %p236 = scmp.ne.s32.totalorder %s228, %s231
      %p237 = scmp.eq.s32.totalorder %s22, 0
      %p238 = por %p236, %p237
      %p239 = scmp.ne.s32.totalorder %s228, %s231
      %p240 = scmp.eq.s32.totalorder %s27, 1
      %p241 = por %p239, %p240
      %p242 = scmp.ne.s32.totalorder %s231, %s232
      %p243 = scmp.eq.s32.totalorder %s27, 0
      %p244 = por %p242, %p243
      %p245 = scmp.ne.s32.totalorder %s231, %s232
      %p246 = scmp.eq.s32.totalorder %s28, 1
      %p247 = por %p245, %p246
      %p249 = scmp.ne.s32.totalorder %s232, %s248
      %p250 = scmp.eq.s32.totalorder %s28, 0
      %p251 = por %p249, %p250
      %s252 = ssub.s32 %s29, %s41
      %s253 = ssub.s32 %s30, %s37
      %s254 = sor.u32 %s252, %s253
      %p255 = scmp.eq.s32.totalorder %s254, 0
      %s257 = sadd.s32 %s256, 1
      %s258 = scalar_select %p255, %s256, %s257
      %p261 = pneg %p255
      %p262 = scmp.eq.s32.totalorder %s22, 1
      %p263 = por %p261, %p262
      %p264 = scmp.ne.s32.totalorder %s256, %s259
      %p265 = scmp.eq.s32.totalorder %s22, 0
      %p266 = por %p264, %p265
      %p267 = scmp.ne.s32.totalorder %s256, %s259
      %p268 = scmp.eq.s32.totalorder %s27, 1
      %p269 = por %p267, %p268
      %p270 = scmp.ne.s32.totalorder %s259, %s260
      %p271 = scmp.eq.s32.totalorder %s27, 0
      %p272 = por %p270, %p271
      %p273 = scmp.ne.s32.totalorder %s259, %s260
      %p274 = scmp.eq.s32.totalorder %s28, 1
      %p275 = por %p273, %p274
      %p277 = scmp.ne.s32.totalorder %s260, %s276
      %p278 = scmp.eq.s32.totalorder %s28, 0
      %p279 = por %p277, %p278
      %p280 = scmp.le.s32.totalorder 1, %s22
      %p281 = scmp.lt.s32.totalorder %s22, 3
      %p282 = pnand %p280, %p281
      %p283 = pneg %p282
      // Predicated region
      $region9: #{tpu_custom_call.1} parent=5 // pred_check
        _
      $region10: #{tpu_custom_call.1} parent=5 // pred_check_branch
        %285 = sbr.rel (%p282) target = $region12
      $region11: #{tpu_custom_call.1} parent=5 // pred_region
        %s286 = ssub.s32 %s22, 1
        // Predicated region
        $region13: #{tpu_custom_call.1} parent=11 // pred_check
          %p287 = pneg %p83
        $region14: #{tpu_custom_call.1} parent=11 // pred_check_branch
          %289 = sbr.rel (%p287) target = $region16
        $region15: #{tpu_custom_call.1} parent=11 // pred_region
          _
        $region16: #{tpu_custom_call.1} parent=11 // pred_fallthru
          _
        // Predicated region
        $region17: #{tpu_custom_call.1} parent=11 // pred_check
          %p290 = pneg %p104
        $region18: #{tpu_custom_call.1} parent=11 // pred_check_branch
          %292 = sbr.rel (%p290) target = $region20
        $region19: #{tpu_custom_call.1} parent=11 // pred_region
          _
        $region20: #{tpu_custom_call.1} parent=11 // pred_fallthru
          _
        // Predicated region
        $region21: #{tpu_custom_call.1} parent=11 // pred_check
          %p293 = pneg %p125
        $region22: #{tpu_custom_call.1} parent=11 // pred_check_branch
          %295 = sbr.rel (%p293) target = $region24
        $region23: #{tpu_custom_call.1} parent=11 // pred_region
          _
        $region24: #{tpu_custom_call.1} parent=11 // pred_fallthru
          _
        // Predicated region
        $region25: #{tpu_custom_call.1} parent=11 // pred_check
          %p296 = pneg %p146
        $region26: #{tpu_custom_call.1} parent=11 // pred_check_branch
          %298 = sbr.rel (%p296) target = $region28
        $region27: #{tpu_custom_call.1} parent=11 // pred_region
          _
        $region28: #{tpu_custom_call.1} parent=11 // pred_fallthru
          _
        // Predicated region
        $region29: #{tpu_custom_call.1} parent=11 // pred_check
          %p299 = pneg %p167
        $region30: #{tpu_custom_call.1} parent=11 // pred_check_branch
          %301 = sbr.rel (%p299) target = $region32
        $region31: #{tpu_custom_call.1} parent=11 // pred_region
          _
        $region32: #{tpu_custom_call.1} parent=11 // pred_fallthru
          _
        // Predicated region
        $region33: #{tpu_custom_call.1} parent=11 // pred_check
          %p302 = pneg %p188
        $region34: #{tpu_custom_call.1} parent=11 // pred_check_branch
          %304 = sbr.rel (%p302) target = $region36
        $region35: #{tpu_custom_call.1} parent=11 // pred_region
          _
        $region36: #{tpu_custom_call.1} parent=11 // pred_fallthru
          _
      $region12: #{tpu_custom_call.1} parent=5 // pred_fallthru
        _
      %p305 = scmp.lt.s32.totalorder %s22, 2
      // Predicated region
      $region37: #{tpu_custom_call.1} parent=5 // pred_check
        %p306 = pneg %p305
      $region38: #{tpu_custom_call.1} parent=5 // pred_check_branch
        %308 = sbr.rel (%p306) target = $region40
      $region39: #{tpu_custom_call.1} parent=5 // pred_region
        // Predicated region
        $region41: #{tpu_custom_call.1} parent=39 // pred_check
          %p309 = pneg %p56
        $region42: #{tpu_custom_call.1} parent=39 // pred_check_branch
          %311 = sbr.rel (%p309) target = $region44
        $region43: #{tpu_custom_call.1} parent=39 // pred_region
          %s312 = smul.u32 2, %s30
          %p313 = scmp.lt.s32.totalorder %s29, 1
          %s314 = scalar_select %p313, %s29, 1
          %p315 = scmp.lt.s32.totalorder %s312, 1
          %s316 = scalar_select %p315, %s312, 1
          %s317 = smul.addr %s314, 2
          %s318 = sadd.s32 %s316, %s317
          %s319 = smul.addr %s318, 4
          %s320 = scalar_lea.vmem %s0, %s319
          %s321 = smul.u32 2, %s30
        $region44: #{tpu_custom_call.1} parent=39 // pred_fallthru
          _
      $region40: #{tpu_custom_call.1} parent=5 // pred_fallthru
        _
      %p322 = scmp.le.s32.totalorder 1, %s22
      %p323 = scmp.lt.s32.totalorder %s22, 3
      %p324 = pnand %p322, %p323
      %p325 = pneg %p324
      // Predicated region
      $region45: #{tpu_custom_call.1} parent=5 // pred_check
        _
      $region46: #{tpu_custom_call.1} parent=5 // pred_check_branch
        %327 = sbr.rel (%p324) target = $region48
      $region47: #{tpu_custom_call.1} parent=5 // pred_region
        %s328 = ssub.s32 %s22, 1
        %s329 = smul.u32 2, %s32
        %p330 = scmp.lt.s32.totalorder %s31, 1
        %s331 = scalar_select %p330, %s31, 1
        %p332 = scmp.lt.s32.totalorder %s329, 1
        %s333 = scalar_select %p332, %s329, 1
        %s334 = smul.addr %s331, 2
        %s335 = sadd.s32 %s333, %s334
        %s336 = smul.addr %s335, 4
        %s337 = scalar_lea.vmem %s0, %s336
        %p338 = pneg %p62
        %p339 = pneg %p59
        %p340 = pneg %p83
        %p341 = pneg %p80
        %p342 = pneg %p104
        %p343 = pneg %p101
        %p344 = pneg %p125
        %p345 = pneg %p122
        %p346 = pneg %p146
        %p347 = pneg %p143
        %p348 = pneg %p167
        %p349 = pneg %p164
        %p350 = pneg %p188
        %p351 = pneg %p185
        %p352 = pneg %p216
        %p353 = pneg %p213
        %s354 = sand.u32 %s203, 1
        %s355 = scalar_lea.sflag [#allocation3], %s354
        %s356 = sand.u32 %s203, 1
        %s357 = smul.addr %s356, 64
        %s358 = scalar_lea.vmem [#allocation2], %s357
        %p359 = pneg %p244
        %p360 = pneg %p241
        %s361 = sand.u32 %s27, 1
        %s362 = scalar_lea.sflag [#allocation5], %s361
        %s363 = sand.u32 %s231, 1
        %s364 = smul.addr %s363, 64
        %s365 = scalar_lea.vmem [#allocation4], %s364
        %p366 = pneg %p272
        %p367 = pneg %p269
        %s368 = sand.u32 %s27, 1
        %s369 = scalar_lea.sflag [#allocation5], %s368
        %s370 = sand.u32 %s259, 1
        %s371 = smul.addr %s370, 64
        %s372 = scalar_lea.vmem [#allocation6], %s371
        %s373 = smul.u32 2, %s32
        %p374 = scmp.lt.s32.totalorder %s31, 1
        %s375 = scalar_select %p374, %s31, 1
        %p376 = scmp.lt.s32.totalorder %s373, 1
        %s377 = scalar_select %p376, %s373, 1
        %s378 = smul.addr %s375, 2
        %s379 = sadd.s32 %s377, %s378
        %s380 = smul.addr %s379, 4
        %s381 = scalar_lea.vmem %s0, %s380
        %s382 = smul.u32 2, %s32
        %s383 = smul.u32 2, %s32
        %s384 = smul.u32 2, %s32
        %s385 = smul.u32 2, %s32
        %v386 = vld [vmem:[%s381] sm:$0xff]
        %v387 = vld [vmem:[%s1] sm:$0xff]
        %v388 = vld [vmem:[%s1 + $0x8] sm:$0xff]
        %v389 = vld [vmem:[%s1 + $0x10] sm:$0xff]
        %v390 = vld [vmem:[%s1 + $0x18] sm:$0xff]
        %v391 = vld [vmem:[%s2] sm:$0xff]
        %v392 = vld [vmem:[%s2 + $0x8] sm:$0xff]
        %v393 = vld [vmem:[%s2 + $0x10] sm:$0xff]
        %v394 = vld [vmem:[%s2 + $0x18] sm:$0xff]
        %396 = vset.pattern.permute.xlu0 0
        %397 = vperm.xlu0 %396, %v391
        %v398 = vpop.permute.xlu0 %397
        %401 = vset.pattern.permute.xlu0 0
        %402 = vperm.xlu0 %401, %v392
        %v403 = vpop.permute.xlu0 %402
        %406 = vset.pattern.permute.xlu0 0
        %407 = vperm.xlu0 %406, %v393
        %v408 = vpop.permute.xlu0 %407
        %411 = vset.pattern.permute.xlu0 0
        %412 = vperm.xlu0 %411, %v394
        %v413 = vpop.permute.xlu0 %412
        %v416 = vcombine.high %v386, %v386
        %vm417 = vcmask 31744
        %v419 = vsel %vm417, %v387, 0
        %v422 = vsel %vm417, %v388, 0
        %v425 = vsel %vm417, %v389, 0
        %v428 = vsel %vm417, %v390, 0
        %vm430 = vcmask 1043456
        %v431 = vsel %vm430, %v386, 0
        %v433 = vsel %vm430, %v416, 0
        %435 = vmatprep.subr.mxu0 %v433
        %436 = vmatpush1.msra.mxu0 %v431
        %437 = vmatprep.subr.mxu0 0.0
        %438 = vmatpush1.msra.mxu0 0.0
        %439 = vmatprep.subr.mxu0 0.0
        %440 = vmatpush1.msra.mxu0 0.0
        %441 = vmatprep.subr.mxu0 0.0
        %442 = vmatpush1.msra.mxu0 0.0
        %443 = vmatprep.subr.mxu0 0.0
        %444 = vmatpush1.msra.mxu0 0.0
        %445 = vmatprep.subr.mxu0 0.0
        %446 = vmatpush1.msra.mxu0 0.0
        %447 = vmatprep.subr.mxu0 0.0
        %448 = vmatpush1.msra.mxu0 0.0
        %449 = vmatprep.subr.mxu0 0.0
        %450 = vmatpush1.msra.mxu0 0.0
        %451 = vmatprep.subr.mxu0 0.0
        %452 = vmatpush1.msra.mxu0 0.0
        %453 = vmatprep.subr.mxu0 0.0
        %454 = vmatpush1.msra.mxu0 0.0
        %455 = vmatprep.subr.mxu0 0.0
        %456 = vmatpush1.msra.mxu0 0.0
        %457 = vmatprep.subr.mxu0 0.0
        %458 = vmatpush1.msra.mxu0 0.0
        %459 = vmatprep.subr.mxu0 0.0
        %460 = vmatpush1.msra.mxu0 0.0
        %461 = vmatprep.subr.mxu0 0.0
        %462 = vmatpush1.msra.mxu0 0.0
        %463 = vmatprep.subr.mxu0 0.0
        %464 = vmatpush1.msra.mxu0 0.0
        %465 = vmatprep.subr.mxu0 0.0
        %466 = vmatpush1.msra.mxu0 0.0
        %467 = vmatprep.subr.mxu0 0.0
        %468 = vmatpush1.msra.mxu0 0.0
        %469 = vmatprep.subr.mxu0 0.0
        %470 = vmatpush1.msra.mxu0 0.0
        %471 = vmatprep.subr.mxu0 0.0
        %472 = vmatpush1.msra.mxu0 0.0
        %473 = vmatprep.subr.mxu0 0.0
        %474 = vmatpush1.msra.mxu0 0.0
        %475 = vmatprep.subr.mxu0 0.0
        %476 = vmatpush1.msra.mxu0 0.0
        %477 = vmatprep.subr.mxu0 0.0
        %478 = vmatpush1.msra.mxu0 0.0
        %479 = vmatprep.subr.mxu0 0.0
        %480 = vmatpush1.msra.mxu0 0.0
        %481 = vmatprep.subr.mxu0 0.0
        %482 = vmatpush1.msra.mxu0 0.0
        %483 = vmatprep.subr.mxu0 0.0
        %484 = vmatpush1.msra.mxu0 0.0
        %485 = vmatprep.subr.mxu0 0.0
        %486 = vmatpush1.msra.mxu0 0.0
        %487 = vmatprep.subr.mxu0 0.0
        %488 = vmatpush1.msra.mxu0 0.0
        %489 = vmatprep.subr.mxu0 0.0
        %490 = vmatpush1.msra.mxu0 0.0
        %491 = vmatprep.subr.mxu0 0.0
        %492 = vmatpush1.msra.mxu0 0.0
        %493 = vmatprep.subr.mxu0 0.0
        %494 = vmatpush1.msra.mxu0 0.0
        %495 = vmatprep.subr.mxu0 0.0
        %496 = vmatpush1.msra.mxu0 0.0
        %497 = vmatprep.subr.mxu0 0.0
        %498 = vmatpush1.msra.mxu0 0.0
        %499 = vmatprep.mubr.f32.mxu0 0.0
        %500 = vmatmul.mubr.f32.gmra.mrb[0].mxu0 %v419
        %v501 = vpop.f32.mrb[0].mxu0
        %v502 = vadd.f32 %v398, %v501
        %v503 = vpop.f32.mrb[0].mxu0
        %v504 = vadd.f32 %v398, %v503
        %505 = vmatprep.mubr.f32.mxu0 0.0
        %506 = vmatmul.mubr.f32.gmra.mrb[0].mxu0 %v422
        %v507 = vpop.f32.mrb[0].mxu0
        %v508 = vadd.f32 %v403, %v507
        %v509 = vpop.f32.mrb[0].mxu0
        %v510 = vadd.f32 %v403, %v509
        %511 = vmatprep.mubr.f32.mxu0 0.0
        %512 = vmatmul.mubr.f32.gmra.mrb[0].mxu0 %v425
        %v513 = vpop.f32.mrb[0].mxu0
        %v514 = vadd.f32 %v408, %v513
        %v515 = vpop.f32.mrb[0].mxu0
        %v516 = vadd.f32 %v408, %v515
        %517 = vmatprep.mubr.f32.mxu0 0.0
        %518 = vmatmul.mubr.f32.gmra.mrb[0].mxu0 %v428
        %v519 = vpop.f32.mrb[0].mxu0
        %v520 = vadd.f32 %v413, %v519
        %v521 = vpop.f32.mrb[0].mxu0
        %v522 = vadd.f32 %v413, %v521
        %523 = vdwg.mxu0
        %524 = vst [vmem:[%s358] sm:$0xff] %v502
        %525 = vst [vmem:[%s358 + $0x8] sm:$0xff] %v504
        %526 = vst [vmem:[%s358 + $0x10] sm:$0xff] %v508
        %527 = vst [vmem:[%s358 + $0x18] sm:$0xff] %v510
        %528 = vst [vmem:[%s358 + $0x20] sm:$0xff] %v514
        %529 = vst [vmem:[%s358 + $0x28] sm:$0xff] %v516
        %530 = vst [vmem:[%s358 + $0x30] sm:$0xff] %v520
        %531 = vst [vmem:[%s358 + $0x38] sm:$0xff] %v522
        %v532 = vld [vmem:[%s3] sm:$0xff]
        %v533 = vld [vmem:[%s3 + $0x8] sm:$0xff]
        %v534 = vld [vmem:[%s3 + $0x10] sm:$0xff]
        %v535 = vld [vmem:[%s3 + $0x18] sm:$0xff]
        %v536 = vld [vmem:[%s4] sm:$0xff]
        %v537 = vld [vmem:[%s4 + $0x8] sm:$0xff]
        %v538 = vld [vmem:[%s4 + $0x10] sm:$0xff]
        %v539 = vld [vmem:[%s4 + $0x18] sm:$0xff]
        %541 = vset.pattern.permute.xlu0 0
        %542 = vperm.xlu0 %541, %v536
        %v543 = vpop.permute.xlu0 %542
        %546 = vset.pattern.permute.xlu0 0
        %547 = vperm.xlu0 %546, %v537
        %v548 = vpop.permute.xlu0 %547
        %551 = vset.pattern.permute.xlu0 0
        %552 = vperm.xlu0 %551, %v538
        %v553 = vpop.permute.xlu0 %552
        %556 = vset.pattern.permute.xlu0 0
        %557 = vperm.xlu0 %556, %v539
        %v558 = vpop.permute.xlu0 %557
        %v561 = vsel %vm417, %v532, 0
        %v564 = vsel %vm417, %v533, 0
        %v567 = vsel %vm417, %v534, 0
        %v570 = vsel %vm417, %v535, 0
        %572 = vmatprep.subr.mxu0 %v433
        %573 = vmatpush1.msra.mxu0 %v431
        %574 = vmatprep.subr.mxu0 0.0
        %575 = vmatpush1.msra.mxu0 0.0
        %576 = vmatprep.subr.mxu0 0.0
        %577 = vmatpush1.msra.mxu0 0.0
        %578 = vmatprep.subr.mxu0 0.0
        %579 = vmatpush1.msra.mxu0 0.0
        %580 = vmatprep.subr.mxu0 0.0
        %581 = vmatpush1.msra.mxu0 0.0
        %582 = vmatprep.subr.mxu0 0.0
        %583 = vmatpush1.msra.mxu0 0.0
        %584 = vmatprep.subr.mxu0 0.0
        %585 = vmatpush1.msra.mxu0 0.0
        %586 = vmatprep.subr.mxu0 0.0
        %587 = vmatpush1.msra.mxu0 0.0
        %588 = vmatprep.subr.mxu0 0.0
        %589 = vmatpush1.msra.mxu0 0.0
        %590 = vmatprep.subr.mxu0 0.0
        %591 = vmatpush1.msra.mxu0 0.0
        %592 = vmatprep.subr.mxu0 0.0
        %593 = vmatpush1.msra.mxu0 0.0
        %594 = vmatprep.subr.mxu0 0.0
        %595 = vmatpush1.msra.mxu0 0.0
        %596 = vmatprep.subr.mxu0 0.0
        %597 = vmatpush1.msra.mxu0 0.0
        %598 = vmatprep.subr.mxu0 0.0
        %599 = vmatpush1.msra.mxu0 0.0
        %600 = vmatprep.subr.mxu0 0.0
        %601 = vmatpush1.msra.mxu0 0.0
        %602 = vmatprep.subr.mxu0 0.0
        %603 = vmatpush1.msra.mxu0 0.0
        %604 = vmatprep.subr.mxu0 0.0
        %605 = vmatpush1.msra.mxu0 0.0
        %606 = vmatprep.subr.mxu0 0.0
        %607 = vmatpush1.msra.mxu0 0.0
        %608 = vmatprep.subr.mxu0 0.0
        %609 = vmatpush1.msra.mxu0 0.0
        %610 = vmatprep.subr.mxu0 0.0
        %611 = vmatpush1.msra.mxu0 0.0
        %612 = vmatprep.subr.mxu0 0.0
        %613 = vmatpush1.msra.mxu0 0.0
        %614 = vmatprep.subr.mxu0 0.0
        %615 = vmatpush1.msra.mxu0 0.0
        %616 = vmatprep.subr.mxu0 0.0
        %617 = vmatpush1.msra.mxu0 0.0
        %618 = vmatprep.subr.mxu0 0.0
        %619 = vmatpush1.msra.mxu0 0.0
        %620 = vmatprep.subr.mxu0 0.0
        %621 = vmatpush1.msra.mxu0 0.0
        %622 = vmatprep.subr.mxu0 0.0
        %623 = vmatpush1.msra.mxu0 0.0
        %624 = vmatprep.subr.mxu0 0.0
        %625 = vmatpush1.msra.mxu0 0.0
        %626 = vmatprep.subr.mxu0 0.0
        %627 = vmatpush1.msra.mxu0 0.0
        %628 = vmatprep.subr.mxu0 0.0
        %629 = vmatpush1.msra.mxu0 0.0
        %630 = vmatprep.subr.mxu0 0.0
        %631 = vmatpush1.msra.mxu0 0.0
        %632 = vmatprep.subr.mxu0 0.0
        %633 = vmatpush1.msra.mxu0 0.0
        %634 = vmatprep.subr.mxu0 0.0
        %635 = vmatpush1.msra.mxu0 0.0
        %636 = vmatprep.mubr.f32.mxu0 0.0
        %637 = vmatmul.mubr.f32.gmra.mrb[0].mxu0 %v561
        %v638 = vpop.f32.mrb[0].mxu0
        %v639 = vadd.f32 %v543, %v638
        %v640 = vpop.f32.mrb[0].mxu0
        %v641 = vadd.f32 %v543, %v640
        %642 = vmatprep.mubr.f32.mxu0 0.0
        %643 = vmatmul.mubr.f32.gmra.mrb[0].mxu0 %v564
        %v644 = vpop.f32.mrb[0].mxu0
        %v645 = vadd.f32 %v548, %v644
        %v646 = vpop.f32.mrb[0].mxu0
        %v647 = vadd.f32 %v548, %v646
        %648 = vmatprep.mubr.f32.mxu0 0.0
        %649 = vmatmul.mubr.f32.gmra.mrb[0].mxu0 %v567
        %v650 = vpop.f32.mrb[0].mxu0
        %v651 = vadd.f32 %v553, %v650
        %v652 = vpop.f32.mrb[0].mxu0
        %v653 = vadd.f32 %v553, %v652
        %654 = vmatprep.mubr.f32.mxu0 0.0
        %655 = vmatmul.mubr.f32.gmra.mrb[0].mxu0 %v570
        %v656 = vpop.f32.mrb[0].mxu0
        %v657 = vadd.f32 %v558, %v656
        %v658 = vpop.f32.mrb[0].mxu0
        %v659 = vadd.f32 %v558, %v658
        %660 = vdwg.mxu0
        %661 = vst [vmem:[%s365] sm:$0xff] %v639
        %662 = vst [vmem:[%s365 + $0x8] sm:$0xff] %v641
        %663 = vst [vmem:[%s365 + $0x10] sm:$0xff] %v645
        %664 = vst [vmem:[%s365 + $0x18] sm:$0xff] %v647
        %665 = vst [vmem:[%s365 + $0x20] sm:$0xff] %v651
        %666 = vst [vmem:[%s365 + $0x28] sm:$0xff] %v653
        %667 = vst [vmem:[%s365 + $0x30] sm:$0xff] %v657
        %668 = vst [vmem:[%s365 + $0x38] sm:$0xff] %v659
        %v669 = vld [vmem:[%s5] sm:$0xff]
        %v670 = vld [vmem:[%s5 + $0x8] sm:$0xff]
        %v671 = vld [vmem:[%s5 + $0x10] sm:$0xff]
        %v672 = vld [vmem:[%s5 + $0x18] sm:$0xff]
        %v673 = vld [vmem:[%s6] sm:$0xff]
        %v674 = vld [vmem:[%s6 + $0x8] sm:$0xff]
        %v675 = vld [vmem:[%s6 + $0x10] sm:$0xff]
        %v676 = vld [vmem:[%s6 + $0x18] sm:$0xff]
        %678 = vset.pattern.permute.xlu0 0
        %679 = vperm.xlu0 %678, %v673
        %v680 = vpop.permute.xlu0 %679
        %683 = vset.pattern.permute.xlu0 0
        %684 = vperm.xlu0 %683, %v674
        %v685 = vpop.permute.xlu0 %684
        %688 = vset.pattern.permute.xlu0 0
        %689 = vperm.xlu0 %688, %v675
        %v690 = vpop.permute.xlu0 %689
        %693 = vset.pattern.permute.xlu0 0
        %694 = vperm.xlu0 %693, %v676
        %v695 = vpop.permute.xlu0 %694
        %v698 = vsel %vm417, %v669, 0
        %v701 = vsel %vm417, %v670, 0
        %v704 = vsel %vm417, %v671, 0
        %v707 = vsel %vm417, %v672, 0
        %709 = vmatprep.subr.mxu0 %v433
        %710 = vmatpush1.msra.mxu0 %v431
        %711 = vmatprep.subr.mxu0 0.0
        %712 = vmatpush1.msra.mxu0 0.0
        %713 = vmatprep.subr.mxu0 0.0
        %714 = vmatpush1.msra.mxu0 0.0
        %715 = vmatprep.subr.mxu0 0.0
        %716 = vmatpush1.msra.mxu0 0.0
        %717 = vmatprep.subr.mxu0 0.0
        %718 = vmatpush1.msra.mxu0 0.0
        %719 = vmatprep.subr.mxu0 0.0
        %720 = vmatpush1.msra.mxu0 0.0
        %721 = vmatprep.subr.mxu0 0.0
        %722 = vmatpush1.msra.mxu0 0.0
        %723 = vmatprep.subr.mxu0 0.0
        %724 = vmatpush1.msra.mxu0 0.0
        %725 = vmatprep.subr.mxu0 0.0
        %726 = vmatpush1.msra.mxu0 0.0
        %727 = vmatprep.subr.mxu0 0.0
        %728 = vmatpush1.msra.mxu0 0.0
        %729 = vmatprep.subr.mxu0 0.0
        %730 = vmatpush1.msra.mxu0 0.0
        %731 = vmatprep.subr.mxu0 0.0
        %732 = vmatpush1.msra.mxu0 0.0
        %733 = vmatprep.subr.mxu0 0.0
        %734 = vmatpush1.msra.mxu0 0.0
        %735 = vmatprep.subr.mxu0 0.0
        %736 = vmatpush1.msra.mxu0 0.0
        %737 = vmatprep.subr.mxu0 0.0
        %738 = vmatpush1.msra.mxu0 0.0
        %739 = vmatprep.subr.mxu0 0.0
        %740 = vmatpush1.msra.mxu0 0.0
        %741 = vmatprep.subr.mxu0 0.0
        %742 = vmatpush1.msra.mxu0 0.0
        %743 = vmatprep.subr.mxu0 0.0
        %744 = vmatpush1.msra.mxu0 0.0
        %745 = vmatprep.subr.mxu0 0.0
        %746 = vmatpush1.msra.mxu0 0.0
        %747 = vmatprep.subr.mxu0 0.0
        %748 = vmatpush1.msra.mxu0 0.0
        %749 = vmatprep.subr.mxu0 0.0
        %750 = vmatpush1.msra.mxu0 0.0
        %751 = vmatprep.subr.mxu0 0.0
        %752 = vmatpush1.msra.mxu0 0.0
        %753 = vmatprep.subr.mxu0 0.0
        %754 = vmatpush1.msra.mxu0 0.0
        %755 = vmatprep.subr.mxu0 0.0
        %756 = vmatpush1.msra.mxu0 0.0
        %757 = vmatprep.subr.mxu0 0.0
        %758 = vmatpush1.msra.mxu0 0.0
        %759 = vmatprep.subr.mxu0 0.0
        %760 = vmatpush1.msra.mxu0 0.0
        %761 = vmatprep.subr.mxu0 0.0
        %762 = vmatpush1.msra.mxu0 0.0
        %763 = vmatprep.subr.mxu0 0.0
        %764 = vmatpush1.msra.mxu0 0.0
        %765 = vmatprep.subr.mxu0 0.0
        %766 = vmatpush1.msra.mxu0 0.0
        %767 = vmatprep.subr.mxu0 0.0
        %768 = vmatpush1.msra.mxu0 0.0
        %769 = vmatprep.subr.mxu0 0.0
        %770 = vmatpush1.msra.mxu0 0.0
        %771 = vmatprep.subr.mxu0 0.0
        %772 = vmatpush1.msra.mxu0 0.0
        %773 = vmatprep.mubr.f32.mxu0 0.0
        %774 = vmatmul.mubr.f32.gmra.mrb[0].mxu0 %v698
        %v775 = vpop.f32.mrb[0].mxu0
        %v776 = vadd.f32 %v680, %v775
        %v777 = vpop.f32.mrb[0].mxu0
        %v778 = vadd.f32 %v680, %v777
        %779 = vmatprep.mubr.f32.mxu0 0.0
        %780 = vmatmul.mubr.f32.gmra.mrb[0].mxu0 %v701
        %v781 = vpop.f32.mrb[0].mxu0
        %v782 = vadd.f32 %v685, %v781
        %v783 = vpop.f32.mrb[0].mxu0
        %v784 = vadd.f32 %v685, %v783
        %785 = vmatprep.mubr.f32.mxu0 0.0
        %786 = vmatmul.mubr.f32.gmra.mrb[0].mxu0 %v704
        %v787 = vpop.f32.mrb[0].mxu0
        %v788 = vadd.f32 %v690, %v787
        %v789 = vpop.f32.mrb[0].mxu0
        %v790 = vadd.f32 %v690, %v789
        %791 = vmatprep.mubr.f32.mxu0 0.0
        %792 = vmatmul.mubr.f32.gmra.mrb[0].mxu0 %v707
        %v793 = vpop.f32.mrb[0].mxu0
        %v794 = vadd.f32 %v695, %v793
        %v795 = vpop.f32.mrb[0].mxu0
        %v796 = vadd.f32 %v695, %v795
        %797 = vdwg.mxu0
        %798 = vst [vmem:[%s372] sm:$0xff] %v776
        %799 = vst [vmem:[%s372 + $0x8] sm:$0xff] %v778
        %800 = vst [vmem:[%s372 + $0x10] sm:$0xff] %v782
        %801 = vst [vmem:[%s372 + $0x18] sm:$0xff] %v784
        %802 = vst [vmem:[%s372 + $0x20] sm:$0xff] %v788
        %803 = vst [vmem:[%s372 + $0x28] sm:$0xff] %v790
        %804 = vst [vmem:[%s372 + $0x30] sm:$0xff] %v794
        %805 = vst [vmem:[%s372 + $0x38] sm:$0xff] %v796
        %s806 = sand.u32 %s203, 1
        %s807 = scalar_lea.sflag [#allocation3], %s806
        %s808 = sand.u32 %s203, 1
        %s809 = smul.addr %s808, 64
        %s810 = scalar_lea.vmem [#allocation2], %s809
        %s811 = sand.u32 %s27, 1
        %s812 = scalar_lea.sflag [#allocation5], %s811
        %s813 = sand.u32 %s231, 1
        %s814 = smul.addr %s813, 64
        %s815 = scalar_lea.vmem [#allocation4], %s814
        %s816 = sand.u32 %s27, 1
        %s817 = scalar_lea.sflag [#allocation5], %s816
        %s818 = sand.u32 %s259, 1
        %s819 = smul.addr %s818, 64
        %s820 = scalar_lea.vmem [#allocation6], %s819
        // Predicated region
        $region49: #{tpu_custom_call.1} parent=47 // pred_check
          %p821 = pneg %p213
        $region50: #{tpu_custom_call.1} parent=47 // pred_check_branch
          %823 = sbr.rel (%p821) target = $region52
        $region51: #{tpu_custom_call.1} parent=47 // pred_region
          %s824 = smul.u32 2, %s32
          %s826 = ssub.s32 1024, 1024
          %827 = vsyncadd %s807, %s826
          %s828 = smul.addr %s31, 8
          %s829 = sadd.s32 %s824, %s828
          %s830 = smul.addr %s829, 128
          %s831 = scalar_lea.hbm %s7, %s830
          %s832 = sshll.u32 %s810, 4
          %s833 = int_to_ptr.vmem [resolvable:$true] %s832
          %838 = dma.vmem_to_hbm [thread:$0]  %s833, 1024, %s831, %s807, 256, 256, 16
        $region52: #{tpu_custom_call.1} parent=47 // pred_fallthru
          _
        // Predicated region
        $region53: #{tpu_custom_call.1} parent=47 // pred_check
          %p839 = pneg %p241
        $region54: #{tpu_custom_call.1} parent=47 // pred_check_branch
          %841 = sbr.rel (%p839) target = $region56
        $region55: #{tpu_custom_call.1} parent=47 // pred_region
          %s842 = smul.u32 2, %s32
          %s844 = ssub.s32 1024, 1024
          %845 = vsyncadd %s812, %s844
          %s846 = smul.addr %s31, 8
          %s847 = sadd.s32 %s842, %s846
          %s848 = smul.addr %s847, 128
          %s849 = scalar_lea.hbm %s8, %s848
          %s850 = sshll.u32 %s815, 4
          %s851 = int_to_ptr.vmem [resolvable:$true] %s850
          %856 = dma.vmem_to_hbm [thread:$0]  %s851, 1024, %s849, %s812, 256, 256, 16
        $region56: #{tpu_custom_call.1} parent=47 // pred_fallthru
          _
        // Predicated region
        $region57: #{tpu_custom_call.1} parent=47 // pred_check
          %p857 = pneg %p269
        $region58: #{tpu_custom_call.1} parent=47 // pred_check_branch
          %859 = sbr.rel (%p857) target = $region60
        $region59: #{tpu_custom_call.1} parent=47 // pred_region
          %s860 = smul.u32 2, %s32
          %s862 = ssub.s32 1024, 1024
          %863 = vsyncadd %s817, %s862
          %s864 = smul.addr %s31, 8
          %s865 = sadd.s32 %s860, %s864
          %s866 = smul.addr %s865, 128
          %s867 = scalar_lea.hbm %s9, %s866
          %s868 = sshll.u32 %s820, 4
          %s869 = int_to_ptr.vmem [resolvable:$true] %s868
          %874 = dma.vmem_to_hbm [thread:$0]  %s869, 1024, %s867, %s817, 256, 256, 16
        $region60: #{tpu_custom_call.1} parent=47 // pred_fallthru
          _
      $region48: #{tpu_custom_call.1} parent=5 // pred_fallthru
        _
      %p875 = scmp.le.s32.totalorder 2, %s22
      // Predicated region
      $region61: #{tpu_custom_call.1} parent=5 // pred_check
        %p876 = pneg %p875
      $region62: #{tpu_custom_call.1} parent=5 // pred_check_branch
        %878 = sbr.rel (%p876) target = $region64
      $region63: #{tpu_custom_call.1} parent=5 // pred_region
        %s879 = ssub.s32 %s22, 2
        // Predicated region
        $region65: #{tpu_custom_call.1} parent=63 // pred_check
          %p880 = pneg %p219
        $region66: #{tpu_custom_call.1} parent=63 // pred_check_branch
          %882 = sbr.rel (%p880) target = $region68
        $region67: #{tpu_custom_call.1} parent=63 // pred_region
          %s883 = sand.u32 %s204, 1
          %s884 = scalar_lea.sflag [#allocation3], %s883
          %s885 = sand.u32 %s204, 1
          %s886 = smul.addr %s885, 64
          %s887 = scalar_lea.vmem [#allocation2], %s886
          %888 = dma.done %s884, 1024
        $region68: #{tpu_custom_call.1} parent=63 // pred_fallthru
          _
        // Predicated region
        $region69: #{tpu_custom_call.1} parent=63 // pred_check
          %p889 = pneg %p247
        $region70: #{tpu_custom_call.1} parent=63 // pred_check_branch
          %891 = sbr.rel (%p889) target = $region72
        $region71: #{tpu_custom_call.1} parent=63 // pred_region
          %s892 = sand.u32 %s28, 1
          %s893 = scalar_lea.sflag [#allocation5], %s892
          %s894 = sand.u32 %s232, 1
          %s895 = smul.addr %s894, 64
          %s896 = scalar_lea.vmem [#allocation4], %s895
          %897 = dma.done %s893, 1024
        $region72: #{tpu_custom_call.1} parent=63 // pred_fallthru
          _
        // Predicated region
        $region73: #{tpu_custom_call.1} parent=63 // pred_check
          %p898 = pneg %p275
        $region74: #{tpu_custom_call.1} parent=63 // pred_check_branch
          %900 = sbr.rel (%p898) target = $region76
        $region75: #{tpu_custom_call.1} parent=63 // pred_region
          %s901 = sand.u32 %s28, 1
          %s902 = scalar_lea.sflag [#allocation5], %s901
          %s903 = sand.u32 %s260, 1
          %s904 = smul.addr %s903, 64
          %s905 = scalar_lea.vmem [#allocation6], %s904
          %906 = dma.done %s902, 1024
        $region76: #{tpu_custom_call.1} parent=63 // pred_fallthru
          _
      $region64: #{tpu_custom_call.1} parent=5 // pred_fallthru
        _
    $region6: #{tpu_custom_call.1} parent=1 // loop_footer
      %s26 = sadd.s32 1, %s22
    $region7: #{tpu_custom_call.1} parent=1 // loop_footer_branch
      %21 = sbr.rel target = $region3
    $region8: #{tpu_custom_call.1} parent=1 // loop_exit
      _
    %907 = vsyncpa [#allocation3], 1
    %s908 = scalar_lea.sflag [#allocation3], 1
    %909 = vsyncpa %s908, 1
    %910 = vsyncpa [#allocation5], 1
    %s911 = scalar_lea.sflag [#allocation5], 1
    %912 = vsyncpa %s911, 1

// kernel: tpu_custom_call.1
$region0: #{tpu_custom_call.1}
  #allocation0 [shape = 'u32[]', space=smem, size = 0x4, offset = 0x4, fixed_abs, tag = 'smem constant byte address 0x4 - core index']
  #allocation1 [shape = 'u32[144,128]{1,0:T(1,128)}', space=vmem, size = 0x12000, scoped, tag = 'internal scratch']
  %s0 = inlined_call_operand.vmem [shape: f32[2,4,256], index: 0, kind: input, shape index: {}]
  %s1 = inlined_call_operand.vmem [shape: f32[32,4], index: 1, kind: input, shape index: {}]
  %s2 = inlined_call_operand.vmem [shape: f32[32,1], index: 2, kind: input, shape index: {}]
  %s3 = inlined_call_operand.vmem [shape: f32[32,4], index: 3, kind: input, shape index: {}]
  %s4 = inlined_call_operand.vmem [shape: f32[32,1], index: 4, kind: input, shape index: {}]
  %s5 = inlined_call_operand.vmem [shape: f32[32,4], index: 5, kind: input, shape index: {}]
  %s6 = inlined_call_operand.vmem [shape: f32[32,1], index: 6, kind: input, shape index: {}]
  %s7 = inlined_call_operand.hbm [shape: f32[2,32,256], index: 7, kind: output, shape index: {0}]
  %s8 = inlined_call_operand.hbm [shape: f32[2,32,256], index: 8, kind: output, shape index: {1}]
  %s9 = inlined_call_operand.hbm [shape: f32[2,32,256], index: 9, kind: output, shape index: {2}]
  %10 = xla_tuple %s7, %s8, %s9
  %s11 = sld [smem:[#allocation0]]
  $region77: #{tpu_custom_call.1} parent=0
    _
  %s13 = ssub.s32 1, %s11
  %s14 = scalar_select 0, %s13, %s11
  $region1: #{tpu_custom_call.1} parent=0
    #allocation2 [shape = 'u8[65536]{0}', space=vmem, size = 0x10000, scoped, tag = 'output window, operand 0']
    #allocation3 [shape = 's32[2]{0}', space=sflag, size = 0x8, scoped, tag = 'scoped memory for tpu_custom_call.1']
    #allocation4 [shape = 'u8[65536]{0}', space=vmem, size = 0x10000, scoped, tag = 'output window, operand 1']
    #allocation5 [shape = 's32[2]{0}', space=sflag, size = 0x8, scoped, tag = 'scoped memory for tpu_custom_call.1']
    #allocation6 [shape = 'u8[65536]{0}', space=vmem, size = 0x10000, scoped, tag = 'output window, operand 2']
    %15 = vsyncpa [#allocation3], 0
    %s16 = scalar_lea.sflag [#allocation3], 1
    %17 = vsyncpa %s16, 0
    %18 = vsyncpa [#allocation5], 0
    %s19 = scalar_lea.sflag [#allocation5], 1
    %20 = vsyncpa %s19, 0
    loop: start=0, step=1, limit=4
    $region2: #{tpu_custom_call.1} parent=1 // loop_pre_header
      _
    $region3: #{tpu_custom_call.1} parent=1 // loop_header
      %s22 = sphi 0, %s26
      %p23 = scmp.ge.s32.totalorder %s22, 4
      %s29 = sphi 0, %s41
      %s30 = sphi 0, %s37
      %s31 = sphi 0, %s29
      %s32 = sphi 0, %s30
      %s33 = sphi 0, %s31
      %s34 = sphi 0, %s32
      %s46 = sphi 0, %s48
      %s49 = sphi 0, %s46
      %s50 = sphi 0, %s49
      %s66 = sphi 0, %s50
      %s70 = sphi 0, %s70
      %s72 = sphi 0, %s70
      %s73 = sphi 0, %s72
      %s87 = sphi 0, %s73
      %s91 = sphi 0, %s91
      %s93 = sphi 0, %s91
      %s94 = sphi 0, %s93
      %s108 = sphi 0, %s94
      %s112 = sphi 0, %s112
      %s114 = sphi 0, %s112
      %s115 = sphi 0, %s114
      %s129 = sphi 0, %s115
      %s133 = sphi 0, %s133
      %s135 = sphi 0, %s133
      %s136 = sphi 0, %s135
      %s150 = sphi 0, %s136
      %s154 = sphi 0, %s154
      %s156 = sphi 0, %s154
      %s157 = sphi 0, %s156
      %s171 = sphi 0, %s157
      %s175 = sphi 0, %s175
      %s177 = sphi 0, %s175
      %s178 = sphi 0, %s177
      %s192 = sphi 0, %s178
      %s200 = sphi 0, %s202
      %s203 = sphi 0, %s200
      %s204 = sphi 0, %s203
      %s220 = sphi 0, %s204
      %s228 = sphi 0, %s230
      %s231 = sphi 0, %s228
      %s232 = sphi 0, %s231
      %s248 = sphi 0, %s232
      %s256 = sphi 0, %s258
      %s259 = sphi 0, %s256
      %s260 = sphi 0, %s259
      %s276 = sphi 0, %s260
    $region4: #{tpu_custom_call.1} parent=1 // loop_header_branch
      %25 = sbr.rel (%p23) target = $region8
    $region5: #{tpu_custom_call.1} parent=1 // loop_body
      %s27 = ssub.s32 %s22, 1
      %s28 = ssub.s32 %s22, 2
      %s35 = sadd.s32 1, %s30
      %p36 = scmp.ge.s32.totalorder %s35, 1
      %s37 = scalar_select %p36, 0, %s35
      %s38 = sadd.s32 1, %s29
      %s39 = scalar_select %p36, %s38, %s29
      %p40 = scmp.ge.s32.totalorder %s39, 2
      %s41 = scalar_select %p40, 0, %s39
      %s42 = ssub.s32 %s29, %s41
      %s43 = ssub.s32 %s30, %s37
      %s44 = sor.u32 %s42, %s43
      %p45 = scmp.eq.s32.totalorder %s44, 0
      %s47 = sadd.s32 %s46, 1
      %s48 = scalar_select %p45, %s46, %s47
      %p51 = pneg %p45
      %p52 = scmp.eq.s32.totalorder %s22, 1
      %p53 = por %p51, %p52
      %p54 = scmp.ne.s32.totalorder %s46, %s49
      %p55 = scmp.eq.s32.totalorder %s22, 0
      %p56 = por %p54, %p55
      %p57 = scmp.ne.s32.totalorder %s46, %s49
      %p58 = scmp.eq.s32.totalorder %s27, 1
      %p59 = por %p57, %p58
      %p60 = scmp.ne.s32.totalorder %s49, %s50
      %p61 = scmp.eq.s32.totalorder %s27, 0
      %p62 = por %p60, %p61
      %p63 = scmp.ne.s32.totalorder %s49, %s50
      %p64 = scmp.eq.s32.totalorder %s28, 1
      %p65 = por %p63, %p64
      %p67 = scmp.ne.s32.totalorder %s50, %s66
      %p68 = scmp.eq.s32.totalorder %s28, 0
      %p69 = por %p67, %p68
      %s71 = sadd.s32 %s70, 1
      %p74 = scmp.eq.s32.totalorder %s22, 1
      %p75 = scmp.ne.s32.totalorder %s70, %s72
      %p76 = scmp.eq.s32.totalorder %s22, 0
      %p77 = por %p75, %p76
      %p78 = scmp.ne.s32.totalorder %s70, %s72
      %p79 = scmp.eq.s32.totalorder %s27, 1
      %p80 = por %p78, %p79
      %p81 = scmp.ne.s32.totalorder %s72, %s73
      %p82 = scmp.eq.s32.totalorder %s27, 0
      %p83 = por %p81, %p82
      %p84 = scmp.ne.s32.totalorder %s72, %s73
      %p85 = scmp.eq.s32.totalorder %s28, 1
      %p86 = por %p84, %p85
      %p88 = scmp.ne.s32.totalorder %s73, %s87
      %p89 = scmp.eq.s32.totalorder %s28, 0
      %p90 = por %p88, %p89
      %s92 = sadd.s32 %s91, 1
      %p95 = scmp.eq.s32.totalorder %s22, 1
      %p96 = scmp.ne.s32.totalorder %s91, %s93
      %p97 = scmp.eq.s32.totalorder %s22, 0
      %p98 = por %p96, %p97
      %p99 = scmp.ne.s32.totalorder %s91, %s93
      %p100 = scmp.eq.s32.totalorder %s27, 1
      %p101 = por %p99, %p100
      %p102 = scmp.ne.s32.totalorder %s93, %s94
      %p103 = scmp.eq.s32.totalorder %s27, 0
      %p104 = por %p102, %p103
      %p105 = scmp.ne.s32.totalorder %s93, %s94
      %p106 = scmp.eq.s32.totalorder %s28, 1
      %p107 = por %p105, %p106
      %p109 = scmp.ne.s32.totalorder %s94, %s108
      %p110 = scmp.eq.s32.totalorder %s28, 0
      %p111 = por %p109, %p110
      %s113 = sadd.s32 %s112, 1
      %p116 = scmp.eq.s32.totalorder %s22, 1
      %p117 = scmp.ne.s32.totalorder %s112, %s114
      %p118 = scmp.eq.s32.totalorder %s22, 0
      %p119 = por %p117, %p118
      %p120 = scmp.ne.s32.totalorder %s112, %s114
      %p121 = scmp.eq.s32.totalorder %s27, 1
      %p122 = por %p120, %p121
      %p123 = scmp.ne.s32.totalorder %s114, %s115
      %p124 = scmp.eq.s32.totalorder %s27, 0
      %p125 = por %p123, %p124
      %p126 = scmp.ne.s32.totalorder %s114, %s115
      %p127 = scmp.eq.s32.totalorder %s28, 1
      %p128 = por %p126, %p127
      %p130 = scmp.ne.s32.totalorder %s115, %s129
      %p131 = scmp.eq.s32.totalorder %s28, 0
      %p132 = por %p130, %p131
      %s134 = sadd.s32 %s133, 1
      %p137 = scmp.eq.s32.totalorder %s22, 1
      %p138 = scmp.ne.s32.totalorder %s133, %s135
      %p139 = scmp.eq.s32.totalorder %s22, 0
      %p140 = por %p138, %p139
      %p141 = scmp.ne.s32.totalorder %s133, %s135
      %p142 = scmp.eq.s32.totalorder %s27, 1
      %p143 = por %p141, %p142
      %p144 = scmp.ne.s32.totalorder %s135, %s136
      %p145 = scmp.eq.s32.totalorder %s27, 0
      %p146 = por %p144, %p145
      %p147 = scmp.ne.s32.totalorder %s135, %s136
      %p148 = scmp.eq.s32.totalorder %s28, 1
      %p149 = por %p147, %p148
      %p151 = scmp.ne.s32.totalorder %s136, %s150
      %p152 = scmp.eq.s32.totalorder %s28, 0
      %p153 = por %p151, %p152
      %s155 = sadd.s32 %s154, 1
      %p158 = scmp.eq.s32.totalorder %s22, 1
      %p159 = scmp.ne.s32.totalorder %s154, %s156
      %p160 = scmp.eq.s32.totalorder %s22, 0
      %p161 = por %p159, %p160
      %p162 = scmp.ne.s32.totalorder %s154, %s156
      %p163 = scmp.eq.s32.totalorder %s27, 1
      %p164 = por %p162, %p163
      %p165 = scmp.ne.s32.totalorder %s156, %s157
      %p166 = scmp.eq.s32.totalorder %s27, 0
      %p167 = por %p165, %p166
      %p168 = scmp.ne.s32.totalorder %s156, %s157
      %p169 = scmp.eq.s32.totalorder %s28, 1
      %p170 = por %p168, %p169
      %p172 = scmp.ne.s32.totalorder %s157, %s171
      %p173 = scmp.eq.s32.totalorder %s28, 0
      %p174 = por %p172, %p173
      %s176 = sadd.s32 %s175, 1
      %p179 = scmp.eq.s32.totalorder %s22, 1
      %p180 = scmp.ne.s32.totalorder %s175, %s177
      %p181 = scmp.eq.s32.totalorder %s22, 0
      %p182 = por %p180, %p181
      %p183 = scmp.ne.s32.totalorder %s175, %s177
      %p184 = scmp.eq.s32.totalorder %s27, 1
      %p185 = por %p183, %p184
      %p186 = scmp.ne.s32.totalorder %s177, %s178
      %p187 = scmp.eq.s32.totalorder %s27, 0
      %p188 = por %p186, %p187
      %p189 = scmp.ne.s32.totalorder %s177, %s178
      %p190 = scmp.eq.s32.totalorder %s28, 1
      %p191 = por %p189, %p190
      %p193 = scmp.ne.s32.totalorder %s178, %s192
      %p194 = scmp.eq.s32.totalorder %s28, 0
      %p195 = por %p193, %p194
      %s196 = ssub.s32 %s29, %s41
      %s197 = ssub.s32 %s30, %s37
      %s198 = sor.u32 %s196, %s197
      %p199 = scmp.eq.s32.totalorder %s198, 0
      %s201 = sadd.s32 %s200, 1
      %s202 = scalar_select %p199, %s200, %s201
      %p205 = pneg %p199
      %p206 = scmp.eq.s32.totalorder %s22, 1
      %p207 = por %p205, %p206
      %p208 = scmp.ne.s32.totalorder %s200, %s203
      %p209 = scmp.eq.s32.totalorder %s22, 0
      %p210 = por %p208, %p209
      %p211 = scmp.ne.s32.totalorder %s200, %s203
      %p212 = scmp.eq.s32.totalorder %s27, 1
      %p213 = por %p211, %p212
      %p214 = scmp.ne.s32.totalorder %s203, %s204
      %p215 = scmp.eq.s32.totalorder %s27, 0
      %p216 = por %p214, %p215
      %p217 = scmp.ne.s32.totalorder %s203, %s204
      %p218 = scmp.eq.s32.totalorder %s28, 1
      %p219 = por %p217, %p218
      %p221 = scmp.ne.s32.totalorder %s204, %s220
      %p222 = scmp.eq.s32.totalorder %s28, 0
      %p223 = por %p221, %p222
      %s224 = ssub.s32 %s29, %s41
      %s225 = ssub.s32 %s30, %s37
      %s226 = sor.u32 %s224, %s225
      %p227 = scmp.eq.s32.totalorder %s226, 0
      %s229 = sadd.s32 %s228, 1
      %s230 = scalar_select %p227, %s228, %s229
      %p233 = pneg %p227
      %p234 = scmp.eq.s32.totalorder %s22, 1
      %p235 = por %p233, %p234
      %p236 = scmp.ne.s32.totalorder %s228, %s231
      %p237 = scmp.eq.s32.totalorder %s22, 0
      %p238 = por %p236, %p237
      %p239 = scmp.ne.s32.totalorder %s228, %s231
      %p240 = scmp.eq.s32.totalorder %s27, 1
      %p241 = por %p239, %p240
      %p242 = scmp.ne.s32.totalorder %s231, %s232
      %p243 = scmp.eq.s32.totalorder %s27, 0
      %p244 = por %p242, %p243
      %p245 = scmp.ne.s32.totalorder %s231, %s232
      %p246 = scmp.eq.s32.totalorder %s28, 1
      %p247 = por %p245, %p246
      %p249 = scmp.ne.s32.totalorder %s232, %s248
      %p250 = scmp.eq.s32.totalorder %s28, 0
      %p251 = por %p249, %p250
      %s252 = ssub.s32 %s29, %s41
      %s253 = ssub.s32 %s30, %s37
      %s254 = sor.u32 %s252, %s253
      %p255 = scmp.eq.s32.totalorder %s254, 0
      %s257 = sadd.s32 %s256, 1
      %s258 = scalar_select %p255, %s256, %s257
      %p261 = pneg %p255
      %p262 = scmp.eq.s32.totalorder %s22, 1
      %p263 = por %p261, %p262
      %p264 = scmp.ne.s32.totalorder %s256, %s259
      %p265 = scmp.eq.s32.totalorder %s22, 0
      %p266 = por %p264, %p265
      %p267 = scmp.ne.s32.totalorder %s256, %s259
      %p268 = scmp.eq.s32.totalorder %s27, 1
      %p269 = por %p267, %p268
      %p270 = scmp.ne.s32.totalorder %s259, %s260
      %p271 = scmp.eq.s32.totalorder %s27, 0
      %p272 = por %p270, %p271
      %p273 = scmp.ne.s32.totalorder %s259, %s260
      %p274 = scmp.eq.s32.totalorder %s28, 1
      %p275 = por %p273, %p274
      %p277 = scmp.ne.s32.totalorder %s260, %s276
      %p278 = scmp.eq.s32.totalorder %s28, 0
      %p279 = por %p277, %p278
      %p280 = scmp.le.s32.totalorder 1, %s22
      %p281 = scmp.lt.s32.totalorder %s22, 3
      %p282 = pnand %p280, %p281
      %p283 = pneg %p282
      // Predicated region
      $region9: #{tpu_custom_call.1} parent=5 // pred_check
        _
      $region10: #{tpu_custom_call.1} parent=5 // pred_check_branch
        %285 = sbr.rel (%p282) target = $region12
      $region11: #{tpu_custom_call.1} parent=5 // pred_region
        %s286 = ssub.s32 %s22, 1
        // Predicated region
        $region13: #{tpu_custom_call.1} parent=11 // pred_check
          %p287 = pneg %p83
        $region14: #{tpu_custom_call.1} parent=11 // pred_check_branch
          %289 = sbr.rel (%p287) target = $region16
        $region15: #{tpu_custom_call.1} parent=11 // pred_region
          _
        $region16: #{tpu_custom_call.1} parent=11 // pred_fallthru
          _
        // Predicated region
        $region17: #{tpu_custom_call.1} parent=11 // pred_check
          %p290 = pneg %p104
        $region18: #{tpu_custom_call.1} parent=11 // pred_check_branch
          %292 = sbr.rel (%p290) target = $region20
        $region19: #{tpu_custom_call.1} parent=11 // pred_region
          _
        $region20: #{tpu_custom_call.1} parent=11 // pred_fallthru
          _
        // Predicated region
        $region21: #{tpu_custom_call.1} parent=11 // pred_check
          %p293 = pneg %p125
        $region22: #{tpu_custom_call.1} parent=11 // pred_check_branch
          %295 = sbr.rel (%p293) target = $region24
        $region23: #{tpu_custom_call.1} parent=11 // pred_region
          _
        $region24: #{tpu_custom_call.1} parent=11 // pred_fallthru
          _
        // Predicated region
        $region25: #{tpu_custom_call.1} parent=11 // pred_check
          %p296 = pneg %p146
        $region26: #{tpu_custom_call.1} parent=11 // pred_check_branch
          %298 = sbr.rel (%p296) target = $region28
        $region27: #{tpu_custom_call.1} parent=11 // pred_region
          _
        $region28: #{tpu_custom_call.1} parent=11 // pred_fallthru
          _
        // Predicated region
        $region29: #{tpu_custom_call.1} parent=11 // pred_check
          %p299 = pneg %p167
        $region30: #{tpu_custom_call.1} parent=11 // pred_check_branch
          %301 = sbr.rel (%p299) target = $region32
        $region31: #{tpu_custom_call.1} parent=11 // pred_region
          _
        $region32: #{tpu_custom_call.1} parent=11 // pred_fallthru
          _
        // Predicated region
        $region33: #{tpu_custom_call.1} parent=11 // pred_check
          %p302 = pneg %p188
        $region34: #{tpu_custom_call.1} parent=11 // pred_check_branch
          %304 = sbr.rel (%p302) target = $region36
        $region35: #{tpu_custom_call.1} parent=11 // pred_region
          _
        $region36: #{tpu_custom_call.1} parent=11 // pred_fallthru
          _
      $region12: #{tpu_custom_call.1} parent=5 // pred_fallthru
        _
      %p305 = scmp.lt.s32.totalorder %s22, 2
      // Predicated region
      $region37: #{tpu_custom_call.1} parent=5 // pred_check
        %p306 = pneg %p305
      $region38: #{tpu_custom_call.1} parent=5 // pred_check_branch
        %308 = sbr.rel (%p306) target = $region40
      $region39: #{tpu_custom_call.1} parent=5 // pred_region
        // Predicated region
        $region41: #{tpu_custom_call.1} parent=39 // pred_check
          %p309 = pneg %p56
        $region42: #{tpu_custom_call.1} parent=39 // pred_check_branch
          %311 = sbr.rel (%p309) target = $region44
        $region43: #{tpu_custom_call.1} parent=39 // pred_region
          %s312 = smul.u32 2, %s30
          %p313 = scmp.lt.s32.totalorder %s29, 1
          %s314 = scalar_select %p313, %s29, 1
          %p315 = scmp.lt.s32.totalorder %s312, 1
          %s316 = scalar_select %p315, %s312, 1
          %s317 = smul.addr %s314, 2
          %s318 = sadd.s32 %s316, %s317
          %s319 = smul.addr %s318, 4
          %s320 = scalar_lea.vmem %s0, %s319
          %s321 = smul.u32 2, %s30
        $region44: #{tpu_custom_call.1} parent=39 // pred_fallthru
          _
      $region40: #{tpu_custom_call.1} parent=5 // pred_fallthru
        _
      %p322 = scmp.le.s32.totalorder 1, %s22
      %p323 = scmp.lt.s32.totalorder %s22, 3
      %p324 = pnand %p322, %p323
      %p325 = pneg %p324
      // Predicated region
      $region45: #{tpu_custom_call.1} parent=5 // pred_check
        _
      $region46: #{tpu_custom_call.1} parent=5 // pred_check_branch
        %327 = sbr.rel (%p324) target = $region48
      $region47: #{tpu_custom_call.1} parent=5 // pred_region
        %s328 = ssub.s32 %s22, 1
        %s329 = smul.u32 2, %s32
        %p330 = scmp.lt.s32.totalorder %s31, 1
        %s331 = scalar_select %p330, %s31, 1
        %p332 = scmp.lt.s32.totalorder %s329, 1
        %s333 = scalar_select %p332, %s329, 1
        %s334 = smul.addr %s331, 2
        %s335 = sadd.s32 %s333, %s334
        %s336 = smul.addr %s335, 4
        %s337 = scalar_lea.vmem %s0, %s336
        %p338 = pneg %p62
        %p339 = pneg %p59
        %p340 = pneg %p83
        %p341 = pneg %p80
        %p342 = pneg %p104
        %p343 = pneg %p101
        %p344 = pneg %p125
        %p345 = pneg %p122
        %p346 = pneg %p146
        %p347 = pneg %p143
        %p348 = pneg %p167
        %p349 = pneg %p164
        %p350 = pneg %p188
        %p351 = pneg %p185
        %p352 = pneg %p216
        %p353 = pneg %p213
        %s354 = sand.u32 %s203, 1
        %s355 = scalar_lea.sflag [#allocation3], %s354
        %s356 = sand.u32 %s203, 1
        %s357 = smul.addr %s356, 64
        %s358 = scalar_lea.vmem [#allocation2], %s357
        %p359 = pneg %p244
        %p360 = pneg %p241
        %s361 = sand.u32 %s27, 1
        %s362 = scalar_lea.sflag [#allocation5], %s361
        %s363 = sand.u32 %s231, 1
        %s364 = smul.addr %s363, 64
        %s365 = scalar_lea.vmem [#allocation4], %s364
        %p366 = pneg %p272
        %p367 = pneg %p269
        %s368 = sand.u32 %s27, 1
        %s369 = scalar_lea.sflag [#allocation5], %s368
        %s370 = sand.u32 %s259, 1
        %s371 = smul.addr %s370, 64
        %s372 = scalar_lea.vmem [#allocation6], %s371
        %s373 = smul.u32 2, %s32
        %p374 = scmp.lt.s32.totalorder %s31, 1
        %s375 = scalar_select %p374, %s31, 1
        %p376 = scmp.lt.s32.totalorder %s373, 1
        %s377 = scalar_select %p376, %s373, 1
        %s378 = smul.addr %s375, 2
        %s379 = sadd.s32 %s377, %s378
        %s380 = smul.addr %s379, 4
        %s381 = scalar_lea.vmem %s0, %s380
        %s382 = smul.u32 2, %s32
        %s383 = smul.u32 2, %s32
        %s384 = smul.u32 2, %s32
        %s385 = smul.u32 2, %s32
        %v386 = vld [vmem:[%s381] sm:$0xff]
        %v387 = vld [vmem:[%s1] sm:$0xff]
        %v388 = vld [vmem:[%s1 + $0x8] sm:$0xff]
        %v389 = vld [vmem:[%s1 + $0x10] sm:$0xff]
        %v390 = vld [vmem:[%s1 + $0x18] sm:$0xff]
        %v391 = vld [vmem:[%s2] sm:$0xff]
        %v392 = vld [vmem:[%s2 + $0x8] sm:$0xff]
        %v393 = vld [vmem:[%s2 + $0x10] sm:$0xff]
        %v394 = vld [vmem:[%s2 + $0x18] sm:$0xff]
        %396 = vset.pattern.permute.xlu0 0
        %397 = vperm.xlu0 %396, %v391
        %v398 = vpop.permute.xlu0 %397
        %401 = vset.pattern.permute.xlu0 0
        %402 = vperm.xlu0 %401, %v392
        %v403 = vpop.permute.xlu0 %402
        %406 = vset.pattern.permute.xlu0 0
        %407 = vperm.xlu0 %406, %v393
        %v408 = vpop.permute.xlu0 %407
        %411 = vset.pattern.permute.xlu0 0
        %412 = vperm.xlu0 %411, %v394
        %v413 = vpop.permute.xlu0 %412
        %v416 = vcombine.high %v386, %v386
        %vm417 = vcmask 31744
        %v419 = vsel %vm417, %v387, 0
        %v422 = vsel %vm417, %v388, 0
        %v425 = vsel %vm417, %v389, 0
        %v428 = vsel %vm417, %v390, 0
        %vm430 = vcmask 1043456
        %v431 = vsel %vm430, %v386, 0
        %v433 = vsel %vm430, %v416, 0
        %435 = vmatprep.subr.mxu0 %v433
        %436 = vmatpush1.msra.mxu0 %v431
        %437 = vmatprep.subr.mxu0 0.0
        %438 = vmatpush1.msra.mxu0 0.0
        %439 = vmatprep.subr.mxu0 0.0
        %440 = vmatpush1.msra.mxu0 0.0
        %441 = vmatprep.subr.mxu0 0.0
        %442 = vmatpush1.msra.mxu0 0.0
        %443 = vmatprep.subr.mxu0 0.0
        %444 = vmatpush1.msra.mxu0 0.0
        %445 = vmatprep.subr.mxu0 0.0
        %446 = vmatpush1.msra.mxu0 0.0
        %447 = vmatprep.subr.mxu0 0.0
        %448 = vmatpush1.msra.mxu0 0.0
        %449 = vmatprep.subr.mxu0 0.0
        %450 = vmatpush1.msra.mxu0 0.0
        %451 = vmatprep.subr.mxu0 0.0
        %452 = vmatpush1.msra.mxu0 0.0
        %453 = vmatprep.subr.mxu0 0.0
        %454 = vmatpush1.msra.mxu0 0.0
        %455 = vmatprep.subr.mxu0 0.0
        %456 = vmatpush1.msra.mxu0 0.0
        %457 = vmatprep.subr.mxu0 0.0
        %458 = vmatpush1.msra.mxu0 0.0
        %459 = vmatprep.subr.mxu0 0.0
        %460 = vmatpush1.msra.mxu0 0.0
        %461 = vmatprep.subr.mxu0 0.0
        %462 = vmatpush1.msra.mxu0 0.0
        %463 = vmatprep.subr.mxu0 0.0
        %464 = vmatpush1.msra.mxu0 0.0
        %465 = vmatprep.subr.mxu0 0.0
        %466 = vmatpush1.msra.mxu0 0.0
        %467 = vmatprep.subr.mxu0 0.0
        %468 = vmatpush1.msra.mxu0 0.0
        %469 = vmatprep.subr.mxu0 0.0
        %470 = vmatpush1.msra.mxu0 0.0
        %471 = vmatprep.subr.mxu0 0.0
        %472 = vmatpush1.msra.mxu0 0.0
        %473 = vmatprep.subr.mxu0 0.0
        %474 = vmatpush1.msra.mxu0 0.0
        %475 = vmatprep.subr.mxu0 0.0
        %476 = vmatpush1.msra.mxu0 0.0
        %477 = vmatprep.subr.mxu0 0.0
        %478 = vmatpush1.msra.mxu0 0.0
        %479 = vmatprep.subr.mxu0 0.0
        %480 = vmatpush1.msra.mxu0 0.0
        %481 = vmatprep.subr.mxu0 0.0
        %482 = vmatpush1.msra.mxu0 0.0
        %483 = vmatprep.subr.mxu0 0.0
        %484 = vmatpush1.msra.mxu0 0.0
        %485 = vmatprep.subr.mxu0 0.0
        %486 = vmatpush1.msra.mxu0 0.0
        %487 = vmatprep.subr.mxu0 0.0
        %488 = vmatpush1.msra.mxu0 0.0
        %489 = vmatprep.subr.mxu0 0.0
        %490 = vmatpush1.msra.mxu0 0.0
        %491 = vmatprep.subr.mxu0 0.0
        %492 = vmatpush1.msra.mxu0 0.0
        %493 = vmatprep.subr.mxu0 0.0
        %494 = vmatpush1.msra.mxu0 0.0
        %495 = vmatprep.subr.mxu0 0.0
        %496 = vmatpush1.msra.mxu0 0.0
        %497 = vmatprep.subr.mxu0 0.0
        %498 = vmatpush1.msra.mxu0 0.0
        %499 = vmatprep.mubr.f32.mxu0 0.0
        %500 = vmatmul.mubr.f32.gmra.mrb[0].mxu0 %v419
        %v501 = vpop.f32.mrb[0].mxu0
        %v502 = vadd.f32 %v398, %v501
        %v503 = vpop.f32.mrb[0].mxu0
        %v504 = vadd.f32 %v398, %v503
        %505 = vmatprep.mubr.f32.mxu0 0.0
        %506 = vmatmul.mubr.f32.gmra.mrb[0].mxu0 %v422
        %v507 = vpop.f32.mrb[0].mxu0
        %v508 = vadd.f32 %v403, %v507
        %v509 = vpop.f32.mrb[0].mxu0
        %v510 = vadd.f32 %v403, %v509
        %511 = vmatprep.mubr.f32.mxu0 0.0
        %512 = vmatmul.mubr.f32.gmra.mrb[0].mxu0 %v425
        %v513 = vpop.f32.mrb[0].mxu0
        %v514 = vadd.f32 %v408, %v513
        %v515 = vpop.f32.mrb[0].mxu0
        %v516 = vadd.f32 %v408, %v515
        %517 = vmatprep.mubr.f32.mxu0 0.0
        %518 = vmatmul.mubr.f32.gmra.mrb[0].mxu0 %v428
        %v519 = vpop.f32.mrb[0].mxu0
        %v520 = vadd.f32 %v413, %v519
        %v521 = vpop.f32.mrb[0].mxu0
        %v522 = vadd.f32 %v413, %v521
        %523 = vdwg.mxu0
        %524 = vst [vmem:[%s358] sm:$0xff] %v502
        %525 = vst [vmem:[%s358 + $0x8] sm:$0xff] %v504
        %526 = vst [vmem:[%s358 + $0x10] sm:$0xff] %v508
        %527 = vst [vmem:[%s358 + $0x18] sm:$0xff] %v510
        %528 = vst [vmem:[%s358 + $0x20] sm:$0xff] %v514
        %529 = vst [vmem:[%s358 + $0x28] sm:$0xff] %v516
        %530 = vst [vmem:[%s358 + $0x30] sm:$0xff] %v520
        %531 = vst [vmem:[%s358 + $0x38] sm:$0xff] %v522
        %v532 = vld [vmem:[%s3] sm:$0xff]
        %v533 = vld [vmem:[%s3 + $0x8] sm:$0xff]
        %v534 = vld [vmem:[%s3 + $0x10] sm:$0xff]
        %v535 = vld [vmem:[%s3 + $0x18] sm:$0xff]
        %v536 = vld [vmem:[%s4] sm:$0xff]
        %v537 = vld [vmem:[%s4 + $0x8] sm:$0xff]
        %v538 = vld [vmem:[%s4 + $0x10] sm:$0xff]
        %v539 = vld [vmem:[%s4 + $0x18] sm:$0xff]
        %541 = vset.pattern.permute.xlu0 0
        %542 = vperm.xlu0 %541, %v536
        %v543 = vpop.permute.xlu0 %542
        %546 = vset.pattern.permute.xlu0 0
        %547 = vperm.xlu0 %546, %v537
        %v548 = vpop.permute.xlu0 %547
        %551 = vset.pattern.permute.xlu0 0
        %552 = vperm.xlu0 %551, %v538
        %v553 = vpop.permute.xlu0 %552
        %556 = vset.pattern.permute.xlu0 0
        %557 = vperm.xlu0 %556, %v539
        %v558 = vpop.permute.xlu0 %557
        %v561 = vsel %vm417, %v532, 0
        %v564 = vsel %vm417, %v533, 0
        %v567 = vsel %vm417, %v534, 0
        %v570 = vsel %vm417, %v535, 0
        %572 = vmatprep.subr.mxu0 %v433
        %573 = vmatpush1.msra.mxu0 %v431
        %574 = vmatprep.subr.mxu0 0.0
        %575 = vmatpush1.msra.mxu0 0.0
        %576 = vmatprep.subr.mxu0 0.0
        %577 = vmatpush1.msra.mxu0 0.0
        %578 = vmatprep.subr.mxu0 0.0
        %579 = vmatpush1.msra.mxu0 0.0
        %580 = vmatprep.subr.mxu0 0.0
        %581 = vmatpush1.msra.mxu0 0.0
        %582 = vmatprep.subr.mxu0 0.0
        %583 = vmatpush1.msra.mxu0 0.0
        %584 = vmatprep.subr.mxu0 0.0
        %585 = vmatpush1.msra.mxu0 0.0
        %586 = vmatprep.subr.mxu0 0.0
        %587 = vmatpush1.msra.mxu0 0.0
        %588 = vmatprep.subr.mxu0 0.0
        %589 = vmatpush1.msra.mxu0 0.0
        %590 = vmatprep.subr.mxu0 0.0
        %591 = vmatpush1.msra.mxu0 0.0
        %592 = vmatprep.subr.mxu0 0.0
        %593 = vmatpush1.msra.mxu0 0.0
        %594 = vmatprep.subr.mxu0 0.0
        %595 = vmatpush1.msra.mxu0 0.0
        %596 = vmatprep.subr.mxu0 0.0
        %597 = vmatpush1.msra.mxu0 0.0
        %598 = vmatprep.subr.mxu0 0.0
        %599 = vmatpush1.msra.mxu0 0.0
        %600 = vmatprep.subr.mxu0 0.0
        %601 = vmatpush1.msra.mxu0 0.0
        %602 = vmatprep.subr.mxu0 0.0
        %603 = vmatpush1.msra.mxu0 0.0
        %604 = vmatprep.subr.mxu0 0.0
        %605 = vmatpush1.msra.mxu0 0.0
        %606 = vmatprep.subr.mxu0 0.0
        %607 = vmatpush1.msra.mxu0 0.0
        %608 = vmatprep.subr.mxu0 0.0
        %609 = vmatpush1.msra.mxu0 0.0
        %610 = vmatprep.subr.mxu0 0.0
        %611 = vmatpush1.msra.mxu0 0.0
        %612 = vmatprep.subr.mxu0 0.0
        %613 = vmatpush1.msra.mxu0 0.0
        %614 = vmatprep.subr.mxu0 0.0
        %615 = vmatpush1.msra.mxu0 0.0
        %616 = vmatprep.subr.mxu0 0.0
        %617 = vmatpush1.msra.mxu0 0.0
        %618 = vmatprep.subr.mxu0 0.0
        %619 = vmatpush1.msra.mxu0 0.0
        %620 = vmatprep.subr.mxu0 0.0
        %621 = vmatpush1.msra.mxu0 0.0
        %622 = vmatprep.subr.mxu0 0.0
        %623 = vmatpush1.msra.mxu0 0.0
        %624 = vmatprep.subr.mxu0 0.0
        %625 = vmatpush1.msra.mxu0 0.0
        %626 = vmatprep.subr.mxu0 0.0
        %627 = vmatpush1.msra.mxu0 0.0
        %628 = vmatprep.subr.mxu0 0.0
        %629 = vmatpush1.msra.mxu0 0.0
        %630 = vmatprep.subr.mxu0 0.0
        %631 = vmatpush1.msra.mxu0 0.0
        %632 = vmatprep.subr.mxu0 0.0
        %633 = vmatpush1.msra.mxu0 0.0
        %634 = vmatprep.subr.mxu0 0.0
        %635 = vmatpush1.msra.mxu0 0.0
        %636 = vmatprep.mubr.f32.mxu0 0.0
        %637 = vmatmul.mubr.f32.gmra.mrb[0].mxu0 %v561
        %v638 = vpop.f32.mrb[0].mxu0
        %v639 = vadd.f32 %v543, %v638
        %v640 = vpop.f32.mrb[0].mxu0
        %v641 = vadd.f32 %v543, %v640
        %642 = vmatprep.mubr.f32.mxu0 0.0
        %643 = vmatmul.mubr.f32.gmra.mrb[0].mxu0 %v564
        %v644 = vpop.f32.mrb[0].mxu0
        %v645 = vadd.f32 %v548, %v644
        %v646 = vpop.f32.mrb[0].mxu0
        %v647 = vadd.f32 %v548, %v646
        %648 = vmatprep.mubr.f32.mxu0 0.0
        %649 = vmatmul.mubr.f32.gmra.mrb[0].mxu0 %v567
        %v650 = vpop.f32.mrb[0].mxu0
        %v651 = vadd.f32 %v553, %v650
        %v652 = vpop.f32.mrb[0].mxu0
        %v653 = vadd.f32 %v553, %v652
        %654 = vmatprep.mubr.f32.mxu0 0.0
        %655 = vmatmul.mubr.f32.gmra.mrb[0].mxu0 %v570
        %v656 = vpop.f32.mrb[0].mxu0
        %v657 = vadd.f32 %v558, %v656
        %v658 = vpop.f32.mrb[0].mxu0
        %v659 = vadd.f32 %v558, %v658
        %660 = vdwg.mxu0
        %661 = vst [vmem:[%s365] sm:$0xff] %v639
        %662 = vst [vmem:[%s365 + $0x8] sm:$0xff] %v641
        %663 = vst [vmem:[%s365 + $0x10] sm:$0xff] %v645
        %664 = vst [vmem:[%s365 + $0x18] sm:$0xff] %v647
        %665 = vst [vmem:[%s365 + $0x20] sm:$0xff] %v651
        %666 = vst [vmem:[%s365 + $0x28] sm:$0xff] %v653
        %667 = vst [vmem:[%s365 + $0x30] sm:$0xff] %v657
        %668 = vst [vmem:[%s365 + $0x38] sm:$0xff] %v659
        %v669 = vld [vmem:[%s5] sm:$0xff]
        %v670 = vld [vmem:[%s5 + $0x8] sm:$0xff]
        %v671 = vld [vmem:[%s5 + $0x10] sm:$0xff]
        %v672 = vld [vmem:[%s5 + $0x18] sm:$0xff]
        %v673 = vld [vmem:[%s6] sm:$0xff]
        %v674 = vld [vmem:[%s6 + $0x8] sm:$0xff]
        %v675 = vld [vmem:[%s6 + $0x10] sm:$0xff]
        %v676 = vld [vmem:[%s6 + $0x18] sm:$0xff]
        %678 = vset.pattern.permute.xlu0 0
        %679 = vperm.xlu0 %678, %v673
        %v680 = vpop.permute.xlu0 %679
        %683 = vset.pattern.permute.xlu0 0
        %684 = vperm.xlu0 %683, %v674
        %v685 = vpop.permute.xlu0 %684
        %688 = vset.pattern.permute.xlu0 0
        %689 = vperm.xlu0 %688, %v675
        %v690 = vpop.permute.xlu0 %689
        %693 = vset.pattern.permute.xlu0 0
        %694 = vperm.xlu0 %693, %v676
        %v695 = vpop.permute.xlu0 %694
        %v698 = vsel %vm417, %v669, 0
        %v701 = vsel %vm417, %v670, 0
        %v704 = vsel %vm417, %v671, 0
        %v707 = vsel %vm417, %v672, 0
        %709 = vmatprep.subr.mxu0 %v433
        %710 = vmatpush1.msra.mxu0 %v431
        %711 = vmatprep.subr.mxu0 0.0
        %712 = vmatpush1.msra.mxu0 0.0
        %713 = vmatprep.subr.mxu0 0.0
        %714 = vmatpush1.msra.mxu0 0.0
        %715 = vmatprep.subr.mxu0 0.0
        %716 = vmatpush1.msra.mxu0 0.0
        %717 = vmatprep.subr.mxu0 0.0
        %718 = vmatpush1.msra.mxu0 0.0
        %719 = vmatprep.subr.mxu0 0.0
        %720 = vmatpush1.msra.mxu0 0.0
        %721 = vmatprep.subr.mxu0 0.0
        %722 = vmatpush1.msra.mxu0 0.0
        %723 = vmatprep.subr.mxu0 0.0
        %724 = vmatpush1.msra.mxu0 0.0
        %725 = vmatprep.subr.mxu0 0.0
        %726 = vmatpush1.msra.mxu0 0.0
        %727 = vmatprep.subr.mxu0 0.0
        %728 = vmatpush1.msra.mxu0 0.0
        %729 = vmatprep.subr.mxu0 0.0
        %730 = vmatpush1.msra.mxu0 0.0
        %731 = vmatprep.subr.mxu0 0.0
        %732 = vmatpush1.msra.mxu0 0.0
        %733 = vmatprep.subr.mxu0 0.0
        %734 = vmatpush1.msra.mxu0 0.0
        %735 = vmatprep.subr.mxu0 0.0
        %736 = vmatpush1.msra.mxu0 0.0
        %737 = vmatprep.subr.mxu0 0.0
        %738 = vmatpush1.msra.mxu0 0.0
        %739 = vmatprep.subr.mxu0 0.0
        %740 = vmatpush1.msra.mxu0 0.0
        %741 = vmatprep.subr.mxu0 0.0
        %742 = vmatpush1.msra.mxu0 0.0
        %743 = vmatprep.subr.mxu0 0.0
        %744 = vmatpush1.msra.mxu0 0.0
        %745 = vmatprep.subr.mxu0 0.0
        %746 = vmatpush1.msra.mxu0 0.0
        %747 = vmatprep.subr.mxu0 0.0
        %748 = vmatpush1.msra.mxu0 0.0
        %749 = vmatprep.subr.mxu0 0.0
        %750 = vmatpush1.msra.mxu0 0.0
        %751 = vmatprep.subr.mxu0 0.0
        %752 = vmatpush1.msra.mxu0 0.0
        %753 = vmatprep.subr.mxu0 0.0
        %754 = vmatpush1.msra.mxu0 0.0
        %755 = vmatprep.subr.mxu0 0.0
        %756 = vmatpush1.msra.mxu0 0.0
        %757 = vmatprep.subr.mxu0 0.0
        %758 = vmatpush1.msra.mxu0 0.0
        %759 = vmatprep.subr.mxu0 0.0
        %760 = vmatpush1.msra.mxu0 0.0
        %761 = vmatprep.subr.mxu0 0.0
        %762 = vmatpush1.msra.mxu0 0.0
        %763 = vmatprep.subr.mxu0 0.0
        %764 = vmatpush1.msra.mxu0 0.0
        %765 = vmatprep.subr.mxu0 0.0
        %766 = vmatpush1.msra.mxu0 0.0
        %767 = vmatprep.subr.mxu0 0.0
        %768 = vmatpush1.msra.mxu0 0.0
        %769 = vmatprep.subr.mxu0 0.0
        %770 = vmatpush1.msra.mxu0 0.0
        %771 = vmatprep.subr.mxu0 0.0
        %772 = vmatpush1.msra.mxu0 0.0
        %773 = vmatprep.mubr.f32.mxu0 0.0
        %774 = vmatmul.mubr.f32.gmra.mrb[0].mxu0 %v698
        %v775 = vpop.f32.mrb[0].mxu0
        %v776 = vadd.f32 %v680, %v775
        %v777 = vpop.f32.mrb[0].mxu0
        %v778 = vadd.f32 %v680, %v777
        %779 = vmatprep.mubr.f32.mxu0 0.0
        %780 = vmatmul.mubr.f32.gmra.mrb[0].mxu0 %v701
        %v781 = vpop.f32.mrb[0].mxu0
        %v782 = vadd.f32 %v685, %v781
        %v783 = vpop.f32.mrb[0].mxu0
        %v784 = vadd.f32 %v685, %v783
        %785 = vmatprep.mubr.f32.mxu0 0.0
        %786 = vmatmul.mubr.f32.gmra.mrb[0].mxu0 %v704
        %v787 = vpop.f32.mrb[0].mxu0
        %v788 = vadd.f32 %v690, %v787
        %v789 = vpop.f32.mrb[0].mxu0
        %v790 = vadd.f32 %v690, %v789
        %791 = vmatprep.mubr.f32.mxu0 0.0
        %792 = vmatmul.mubr.f32.gmra.mrb[0].mxu0 %v707
        %v793 = vpop.f32.mrb[0].mxu0
        %v794 = vadd.f32 %v695, %v793
        %v795 = vpop.f32.mrb[0].mxu0
        %v796 = vadd.f32 %v695, %v795
        %797 = vdwg.mxu0
        %798 = vst [vmem:[%s372] sm:$0xff] %v776
        %799 = vst [vmem:[%s372 + $0x8] sm:$0xff] %v778
        %800 = vst [vmem:[%s372 + $0x10] sm:$0xff] %v782
        %801 = vst [vmem:[%s372 + $0x18] sm:$0xff] %v784
        %802 = vst [vmem:[%s372 + $0x20] sm:$0xff] %v788
        %803 = vst [vmem:[%s372 + $0x28] sm:$0xff] %v790
        %804 = vst [vmem:[%s372 + $0x30] sm:$0xff] %v794
        %805 = vst [vmem:[%s372 + $0x38] sm:$0xff] %v796
        %s806 = sand.u32 %s203, 1
        %s807 = scalar_lea.sflag [#allocation3], %s806
        %s808 = sand.u32 %s203, 1
        %s809 = smul.addr %s808, 64
        %s810 = scalar_lea.vmem [#allocation2], %s809
        %s811 = sand.u32 %s27, 1
        %s812 = scalar_lea.sflag [#allocation5], %s811
        %s813 = sand.u32 %s231, 1
        %s814 = smul.addr %s813, 64
        %s815 = scalar_lea.vmem [#allocation4], %s814
        %s816 = sand.u32 %s27, 1
        %s817 = scalar_lea.sflag [#allocation5], %s816
        %s818 = sand.u32 %s259, 1
        %s819 = smul.addr %s818, 64
        %s820 = scalar_lea.vmem [#allocation6], %s819
        // Predicated region
        $region49: #{tpu_custom_call.1} parent=47 // pred_check
          %p821 = pneg %p213
        $region50: #{tpu_custom_call.1} parent=47 // pred_check_branch
          %823 = sbr.rel (%p821) target = $region52
        $region51: #{tpu_custom_call.1} parent=47 // pred_region
          %s824 = smul.u32 2, %s32
          %s826 = ssub.s32 1024, 1024
          %827 = vsyncadd %s807, %s826
          %s828 = smul.addr %s31, 8
          %s829 = sadd.s32 %s824, %s828
          %s830 = smul.addr %s829, 128
          %s831 = scalar_lea.hbm %s7, %s830
          %s832 = sshll.u32 %s810, 4
          %s833 = int_to_ptr.vmem [resolvable:$true] %s832
          %838 = dma.vmem_to_hbm [thread:$0]  %s833, 1024, %s831, %s807, 256, 256, 16
        $region52: #{tpu_custom_call.1} parent=47 // pred_fallthru
          _
        // Predicated region
        $region53: #{tpu_custom_call.1} parent=47 // pred_check
          %p839 = pneg %p241
        $region54: #{tpu_custom_call.1} parent=47 // pred_check_branch
          %841 = sbr.rel (%p839) target = $region56
        $region55: #{tpu_custom_call.1} parent=47 // pred_region
          %s842 = smul.u32 2, %s32
          %s844 = ssub.s32 1024, 1024
          %845 = vsyncadd %s812, %s844
          %s846 = smul.addr %s31, 8
          %s847 = sadd.s32 %s842, %s846
          %s848 = smul.addr %s847, 128
          %s849 = scalar_lea.hbm %s8, %s848
          %s850 = sshll.u32 %s815, 4
          %s851 = int_to_ptr.vmem [resolvable:$true] %s850
          %856 = dma.vmem_to_hbm [thread:$0]  %s851, 1024, %s849, %s812, 256, 256, 16
        $region56: #{tpu_custom_call.1} parent=47 // pred_fallthru
          _
        // Predicated region
        $region57: #{tpu_custom_call.1} parent=47 // pred_check
          %p857 = pneg %p269
        $region58: #{tpu_custom_call.1} parent=47 // pred_check_branch
          %859 = sbr.rel (%p857) target = $region60
        $region59: #{tpu_custom_call.1} parent=47 // pred_region
          %s860 = smul.u32 2, %s32
          %s862 = ssub.s32 1024, 1024
          %863 = vsyncadd %s817, %s862
          %s864 = smul.addr %s31, 8
          %s865 = sadd.s32 %s860, %s864
          %s866 = smul.addr %s865, 128
          %s867 = scalar_lea.hbm %s9, %s866
          %s868 = sshll.u32 %s820, 4
          %s869 = int_to_ptr.vmem [resolvable:$true] %s868
          %874 = dma.vmem_to_hbm [thread:$0]  %s869, 1024, %s867, %s817, 256, 256, 16
        $region60: #{tpu_custom_call.1} parent=47 // pred_fallthru
          _
      $region48: #{tpu_custom_call.1} parent=5 // pred_fallthru
        _
      %p875 = scmp.le.s32.totalorder 2, %s22
      // Predicated region
      $region61: #{tpu_custom_call.1} parent=5 // pred_check
        %p876 = pneg %p875
      $region62: #{tpu_custom_call.1} parent=5 // pred_check_branch
        %878 = sbr.rel (%p876) target = $region64
      $region63: #{tpu_custom_call.1} parent=5 // pred_region
        %s879 = ssub.s32 %s22, 2
        // Predicated region
        $region65: #{tpu_custom_call.1} parent=63 // pred_check
          %p880 = pneg %p219
        $region66: #{tpu_custom_call.1} parent=63 // pred_check_branch
          %882 = sbr.rel (%p880) target = $region68
        $region67: #{tpu_custom_call.1} parent=63 // pred_region
          %s883 = sand.u32 %s204, 1
          %s884 = scalar_lea.sflag [#allocation3], %s883
          %s885 = sand.u32 %s204, 1
          %s886 = smul.addr %s885, 64
          %s887 = scalar_lea.vmem [#allocation2], %s886
          %888 = dma.done %s884, 1024
        $region68: #{tpu_custom_call.1} parent=63 // pred_fallthru
          _
        // Predicated region
        $region69: #{tpu_custom_call.1} parent=63 // pred_check
          %p889 = pneg %p247
        $region70: #{tpu_custom_call.1} parent=63 // pred_check_branch
          %891 = sbr.rel (%p889) target = $region72
        $region71: #{tpu_custom_call.1} parent=63 // pred_region
          %s892 = sand.u32 %s28, 1
          %s893 = scalar_lea.sflag [#allocation5], %s892
          %s894 = sand.u32 %s232, 1
          %s895 = smul.addr %s894, 64
          %s896 = scalar_lea.vmem [#allocation4], %s895
          %897 = dma.done %s893, 1024
        $region72: #{tpu_custom_call.1} parent=63 // pred_fallthru
          _
        // Predicated region
        $region73: #{tpu_custom_call.1} parent=63 // pred_check
          %p898 = pneg %p275
        $region74: #{tpu_custom_call.1} parent=63 // pred_check_branch
          %900 = sbr.rel (%p898) target = $region76
        $region75: #{tpu_custom_call.1} parent=63 // pred_region
          %s901 = sand.u32 %s28, 1
          %s902 = scalar_lea.sflag [#allocation5], %s901
          %s903 = sand.u32 %s260, 1
          %s904 = smul.addr %s903, 64
          %s905 = scalar_lea.vmem [#allocation6], %s904
          %906 = dma.done %s902, 1024
        $region76: #{tpu_custom_call.1} parent=63 // pred_fallthru
          _
      $region64: #{tpu_custom_call.1} parent=5 // pred_fallthru
        _
    $region6: #{tpu_custom_call.1} parent=1 // loop_footer
      %s26 = sadd.s32 1, %s22
    $region7: #{tpu_custom_call.1} parent=1 // loop_footer_branch
      %21 = sbr.rel target = $region3
    $region8: #{tpu_custom_call.1} parent=1 // loop_exit
      _
    %907 = vsyncpa [#allocation3], 1
    %s908 = scalar_lea.sflag [#allocation3], 1
    %909 = vsyncpa %s908, 1
    %910 = vsyncpa [#allocation5], 1
    %s911 = scalar_lea.sflag [#allocation5], 1
    %912 = vsyncpa %s911, 1

</llo_original>
